<compile_context>
chip_gen: v6e
topology: v6e:2x2x1
jax: 0.10.0
libtpu: 0.0.40
codegen_flags: <defaults>
</compile_context>

<pallas_src>
import jax
import jax.numpy as jnp
import numpy as np
from jax import lax
from jax.experimental import pallas as pl
from jax.experimental.pallas import tpu as pltpu

EPS = 1e-5


def _layernorm(x, gamma, beta):
    mu = jnp.mean(x, axis=-1, keepdims=True)
    var = jnp.mean((x - mu) * (x - mu), axis=-1, keepdims=True)
    return (x - mu) * lax.rsqrt(var + EPS) * gamma + beta


def cross_attn_kernel(q_ref, kv_ref,
                      wq_ref, wkv_ref, wo_ref, w1_ref, w2_ref,
                      vece_ref, vech_ref,
                      out_ref):
    BB, Lq, E = q_ref.shape
    Lk = kv_ref.shape[1]

    # f32 copies for the residual / LayerNorm path, bf16 copies for the MXU.
    q_in = q_ref[...].astype(jnp.float32).reshape(BB * Lq, E)
    kv_in = kv_ref[...].astype(jnp.float32).reshape(BB * Lk, E)
    q_bf = q_in.astype(jnp.bfloat16)
    kv_bf = kv_in.astype(jnp.bfloat16)

    # Packed bias / gamma / beta rows (static sublane slices of one tile).
    bq = vece_ref[0:1, :]
    bo = vece_ref[1:2, :]
    g1 = vece_ref[2:3, :]
    be1 = vece_ref[3:4, :]
    b2 = vece_ref[4:5, :]
    g2 = vece_ref[5:6, :]
    be2 = vece_ref[6:7, :]
    bkv = vech_ref[0:1, :]
    b1 = vech_ref[1:2, :]

    # --- attention projections (bf16 x bf16 -> f32 accumulate) ---
    q = jnp.dot(q_bf, wq_ref[...], preferred_element_type=jnp.float32) + bq
    kvp = jnp.dot(kv_bf, wkv_ref[...], preferred_element_type=jnp.float32) + bkv
    k = kvp[:, :E]
    v = kvp[:, E:]

    # --- scaled dot-product attention (1 head), batched over BB ---
    scale = 1.0 / float(np.sqrt(E))
    q3 = (q * scale).astype(jnp.bfloat16).reshape(BB, Lq, E)
    k3 = k.astype(jnp.bfloat16).reshape(BB, Lk, E)
    v3 = v.astype(jnp.bfloat16).reshape(BB, Lk, E)

    # scores[b, q, k] = sum_d q3[b,q,d] * k3[b,k,d]  (no explicit transpose)
    scores = lax.dot_general(
        q3, k3,
        dimension_numbers=(((2,), (2,)), ((0,), (0,))),
        preferred_element_type=jnp.float32)                  # (BB, Lq, Lk)

    m = jnp.max(scores, axis=-1, keepdims=True)
    p = jnp.exp(scores - m)
    inv = pl.reciprocal(jnp.sum(p, axis=-1, keepdims=True), approx=True)
    attn = (p * inv).astype(jnp.bfloat16)

    ctx = lax.dot_general(
        attn, v3,
        dimension_numbers=(((2,), (1,)), ((0,), (0,))),
        preferred_element_type=jnp.float32)                  # (BB, Lq, E)
    ctx = ctx.reshape(BB * Lq, E).astype(jnp.bfloat16)

    attn_out = jnp.dot(ctx, wo_ref[...], preferred_element_type=jnp.float32) + bo

    # --- residual + LayerNorm 1 (f32) ---
    x = _layernorm(q_in + attn_out, g1, be1)

    # --- FFN: Linear(E, 2E) -> ReLU -> Linear(2E, E) ---
    h = jnp.maximum(
        jnp.dot(x.astype(jnp.bfloat16), w1_ref[...],
                preferred_element_type=jnp.float32) + b1, 0.0)
    f = jnp.dot(h.astype(jnp.bfloat16), w2_ref[...],
                preferred_element_type=jnp.float32) + b2

    # --- residual + LayerNorm 2 (f32) ---
    y = _layernorm(x + f, g2, be2)

    # One lane-dense slab store per grid step.
    out_ref[...] = y.reshape(BB, Lq, E).astype(out_ref.dtype)


def cross_attention_block(query, key_value, params, num_blocks=2):
    """query: (B, Lq, E), key_value: (B, Lk, E) -> (B, Lq, E).

    num_blocks: number of grid steps (2 -> one per v7x TensorCore; on
    single-core v5e/v6e the extra step is ~0.35 us of overhead).
    """
    B, Lq, E = query.shape
    _, Lk, _ = key_value.shape
    H = 2 * E

    G = max(1, min(num_blocks, B))
    while B % G != 0:       # fall back to the largest divisor of B
        G -= 1
    BB = B // G

    # Weights in bf16 (halves DMA bytes / VMEM, 2-4x MXU rate), biases in f32.
    wdt = jnp.bfloat16
    wq = params["wq"].astype(wdt)
    wkv = jnp.concatenate([params["wk"], params["wv"]], axis=1).astype(wdt)  # (E, 2E)
    wo = params["wo"].astype(wdt)
    w1 = params["w1"].astype(wdt)
    w2 = params["w2"].astype(wdt)

    # Pack the tiny vectors into two tiles: (8, E) and (2, 2E).
    vec_e = jnp.concatenate(
        [params["bq"], params["bo"], params["g1"], params["be1"],
         params["b2"], params["g2"], params["be2"],
         jnp.zeros((1, E), jnp.float32)], axis=0).astype(jnp.float32)
    vec_h = jnp.concatenate(
        [jnp.concatenate([params["bk"], params["bv"]], axis=1),
         params["b1"]], axis=0).astype(jnp.float32)

    def const(shape):
        n = len(shape)
        return pl.BlockSpec(shape, lambda g: (0,) * n)

    return pl.pallas_call(
        cross_attn_kernel,
        out_shape=jax.ShapeDtypeStruct((B, Lq, E), query.dtype),
        grid=(G,),
        in_specs=[
            pl.BlockSpec((BB, Lq, E), lambda g: (g, 0, 0)),   # query
            pl.BlockSpec((BB, Lk, E), lambda g: (g, 0, 0)),   # key_value
            const((E, E)),      # Wq
            const((E, H)),      # Wk|Wv fused
            const((E, E)),      # Wo
            const((E, H)),      # W1
            const((H, E)),      # W2
            const((8, E)),      # packed E-wide biases / gammas / betas
            const((2, H)),      # packed (bk|bv), b1
        ],
        out_specs=pl.BlockSpec((BB, Lq, E), lambda g: (g, 0, 0)),
        compiler_params=pltpu.CompilerParams(
            dimension_semantics=("parallel",)),
    )(query, key_value, wq, wkv, wo, w1, w2, vec_e, vec_h)


def reference(query, key_value, p):
    """Pure-JAX reference mirroring torch.nn semantics (n_heads=1).

    Weights are rounded through bf16 to match the kernel's parameter storage;
    all arithmetic is f32.
    """
    def bf(w):
        return w.astype(jnp.bfloat16).astype(jnp.float32)

    E = query.shape[-1]
    q = query @ bf(p["wq"]) + p["bq"]
    k = key_value @ bf(p["wk"]) + p["bk"]
    v = key_value @ bf(p["wv"]) + p["bv"]
    scores = jnp.einsum("bqe,bke->bqk", q, k) / jnp.sqrt(jnp.float32(E))
    attn = jax.nn.softmax(scores, axis=-1)
    ao = jnp.einsum("bqk,bke->bqe", attn, v) @ bf(p["wo"]) + p["bo"]

    def ln(x, g, b):
        mu = jnp.mean(x, -1, keepdims=True)
        var = jnp.mean((x - mu) ** 2, -1, keepdims=True)
        return (x - mu) / jnp.sqrt(var + EPS) * g + b

    x = ln(query + ao, p["g1"], p["be1"])
    f = jnp.maximum(x @ bf(p["w1"]) + p["b1"], 0.0) @ bf(p["w2"]) + p["b2"]
    return ln(x + f, p["g2"], p["be2"])


def init_params(key, E):
    H = 2 * E
    ks = jax.random.split(key, 12)
    s = 0.05
    return {
        "wq": jax.random.normal(ks[0], (E, E), jnp.float32) * s,
        "wk": jax.random.normal(ks[1], (E, E), jnp.float32) * s,
        "wv": jax.random.normal(ks[2], (E, E), jnp.float32) * s,
        "wo": jax.random.normal(ks[3], (E, E), jnp.float32) * s,
        "bq": jax.random.normal(ks[4], (1, E), jnp.float32) * s,
        "bk": jax.random.normal(ks[5], (1, E), jnp.float32) * s,
        "bv": jax.random.normal(ks[6], (1, E), jnp.float32) * s,
        "bo": jax.random.normal(ks[7], (1, E), jnp.float32) * s,
        "g1": jnp.ones((1, E), jnp.float32)
              + jax.random.normal(ks[8], (1, E), jnp.float32) * s,
        "be1": jax.random.normal(ks[9], (1, E), jnp.float32) * s,
        "w1": jax.random.normal(ks[10], (E, H), jnp.float32) * s,
        "b1": jnp.zeros((1, H), jnp.float32),
        "w2": jax.random.normal(ks[11], (H, E), jnp.float32) * s,
        "b2": jnp.zeros((1, E), jnp.float32),
        "g2": jnp.ones((1, E), jnp.float32),
        "be2": jnp.zeros((1, E), jnp.float32),
    }


if __name__ == "__main__":
    # hidden_dim=128 matches the module default; n_heads=1.
    B, Lq, Lk, E = 4, 8, 8, 128
    key = jax.random.PRNGKey(0)
    kq, kkv, kp = jax.random.split(key, 3)
    query = jax.random.normal(kq, (B, Lq, E), jnp.float32)
    key_value = jax.random.normal(kkv, (B, Lk, E), jnp.float32)
    params = init_params(kp, E)

    out = cross_attention_block(query, key_value, params, num_blocks=2)
    out = jax.block_until_ready(out)

    ref = jax.block_until_ready(reference(query, key_value, params))
    assert out.shape == (B, Lq, E)
    # bf16 matmul operands + approx reciprocal -> ~1% level differences.
    np.testing.assert_allclose(np.asarray(out), np.asarray(ref),
                               atol=5e-2, rtol=5e-2)
    print("KERNEL_OK")
</pallas_src>

<mosaic_0001>
module attributes {stable_mosaic.version = 11 : i64} {
  func.func @cross_attn_kernel(%arg0: i32, %arg1: memref<2x8x128xf32, #tpu.memory_space<vmem>>, %arg2: memref<2x8x128xf32, #tpu.memory_space<vmem>>, %arg3: memref<128x128xbf16, #tpu.memory_space<vmem>>, %arg4: memref<128x256xbf16, #tpu.memory_space<vmem>>, %arg5: memref<128x128xbf16, #tpu.memory_space<vmem>>, %arg6: memref<128x256xbf16, #tpu.memory_space<vmem>>, %arg7: memref<256x128xbf16, #tpu.memory_space<vmem>>, %arg8: memref<8x128xf32, #tpu.memory_space<vmem>>, %arg9: memref<2x256xf32, #tpu.memory_space<vmem>>, %arg10: memref<2x8x128xf32, #tpu.memory_space<vmem>>) attributes {dimension_semantics = [#tpu.dimension_semantics<parallel>], iteration_bounds = array<i64: 2>, scalar_prefetch = 0 : i64, scratch_operands = 0 : i64, tpu.core_type = #tpu.core_type<tc>, window_params = [{transform_indices = @transform_0, window_bounds = array<i64: 2, 8, 128>}, {transform_indices = @transform_1, window_bounds = array<i64: 2, 8, 128>}, {pipeline_mode = #tpu.pipeline_mode<synchronous>, transform_indices = @transform_2, window_bounds = array<i64: 128, 128>}, {pipeline_mode = #tpu.pipeline_mode<synchronous>, transform_indices = @transform_3, window_bounds = array<i64: 128, 256>}, {pipeline_mode = #tpu.pipeline_mode<synchronous>, transform_indices = @transform_4, window_bounds = array<i64: 128, 128>}, {pipeline_mode = #tpu.pipeline_mode<synchronous>, transform_indices = @transform_5, window_bounds = array<i64: 128, 256>}, {pipeline_mode = #tpu.pipeline_mode<synchronous>, transform_indices = @transform_6, window_bounds = array<i64: 256, 128>}, {pipeline_mode = #tpu.pipeline_mode<synchronous>, transform_indices = @transform_7, window_bounds = array<i64: 8, 128>}, {pipeline_mode = #tpu.pipeline_mode<synchronous>, transform_indices = @transform_8, window_bounds = array<i64: 2, 256>}, {transform_indices = @transform_9, window_bounds = array<i64: 2, 8, 128>}]} {
    %c0 = arith.constant 0 : index
    %c0_0 = arith.constant 0 : index
    %c0_1 = arith.constant 0 : index
    %0 = vector.load %arg1[%c0, %c0_0, %c0_1] : memref<2x8x128xf32, #tpu.memory_space<vmem>>, vector<2x8x128xf32>
    %1 = vector.shape_cast %0 : vector<2x8x128xf32> to vector<16x128xf32>
    %c0_2 = arith.constant 0 : index
    %c0_3 = arith.constant 0 : index
    %c0_4 = arith.constant 0 : index
    %2 = vector.load %arg2[%c0_2, %c0_3, %c0_4] : memref<2x8x128xf32, #tpu.memory_space<vmem>>, vector<2x8x128xf32>
    %3 = vector.shape_cast %2 : vector<2x8x128xf32> to vector<16x128xf32>
    %4 = arith.truncf %1 : vector<16x128xf32> to vector<16x128xbf16>
    %5 = arith.truncf %3 : vector<16x128xf32> to vector<16x128xbf16>
    %c0_5 = arith.constant 0 : index
    %c0_6 = arith.constant 0 : index
    %6 = vector.load %arg8[%c0_5, %c0_6] : memref<8x128xf32, #tpu.memory_space<vmem>>, vector<1x128xf32>
    %c1 = arith.constant 1 : index
    %c0_7 = arith.constant 0 : index
    %7 = vector.load %arg8[%c1, %c0_7] : memref<8x128xf32, #tpu.memory_space<vmem>>, vector<1x128xf32>
    %c2 = arith.constant 2 : index
    %c0_8 = arith.constant 0 : index
    %8 = vector.load %arg8[%c2, %c0_8] : memref<8x128xf32, #tpu.memory_space<vmem>>, vector<1x128xf32>
    %c3 = arith.constant 3 : index
    %c0_9 = arith.constant 0 : index
    %9 = vector.load %arg8[%c3, %c0_9] : memref<8x128xf32, #tpu.memory_space<vmem>>, vector<1x128xf32>
    %c4 = arith.constant 4 : index
    %c0_10 = arith.constant 0 : index
    %10 = vector.load %arg8[%c4, %c0_10] : memref<8x128xf32, #tpu.memory_space<vmem>>, vector<1x128xf32>
    %c5 = arith.constant 5 : index
    %c0_11 = arith.constant 0 : index
    %11 = vector.load %arg8[%c5, %c0_11] : memref<8x128xf32, #tpu.memory_space<vmem>>, vector<1x128xf32>
    %c6 = arith.constant 6 : index
    %c0_12 = arith.constant 0 : index
    %12 = vector.load %arg8[%c6, %c0_12] : memref<8x128xf32, #tpu.memory_space<vmem>>, vector<1x128xf32>
    %c0_13 = arith.constant 0 : index
    %c0_14 = arith.constant 0 : index
    %13 = vector.load %arg9[%c0_13, %c0_14] : memref<2x256xf32, #tpu.memory_space<vmem>>, vector<1x256xf32>
    %c1_15 = arith.constant 1 : index
    %c0_16 = arith.constant 0 : index
    %14 = vector.load %arg9[%c1_15, %c0_16] : memref<2x256xf32, #tpu.memory_space<vmem>>, vector<1x256xf32>
    %c0_17 = arith.constant 0 : index
    %c0_18 = arith.constant 0 : index
    %15 = vector.load %arg3[%c0_17, %c0_18] : memref<128x128xbf16, #tpu.memory_space<vmem>>, vector<128x128xbf16>
    %cst = arith.constant dense<0.000000e+00> : vector<16x128xf32>
    %16 = tpu.matmul %4, %15, %cst {dimension_numbers = #tpu.dot_dimension_numbers<[1], [0], [0], [1], [0, 0, 1, 1], [], []>} : vector<16x128xbf16>, vector<128x128xbf16>, vector<16x128xf32> -> vector<16x128xf32>
    %17 = vector.broadcast %6 : vector<1x128xf32> to vector<16x128xf32>
    %18 = arith.addf %16, %17 : vector<16x128xf32>
    %c0_19 = arith.constant 0 : index
    %c0_20 = arith.constant 0 : index
    %19 = vector.load %arg4[%c0_19, %c0_20] : memref<128x256xbf16, #tpu.memory_space<vmem>>, vector<128x256xbf16>
    %cst_21 = arith.constant dense<0.000000e+00> : vector<16x256xf32>
    %20 = tpu.matmul %5, %19, %cst_21 {dimension_numbers = #tpu.dot_dimension_numbers<[1], [0], [0], [1], [0, 0, 1, 1], [], []>} : vector<16x128xbf16>, vector<128x256xbf16>, vector<16x256xf32> -> vector<16x256xf32>
    %21 = vector.broadcast %13 : vector<1x256xf32> to vector<16x256xf32>
    %22 = arith.addf %20, %21 : vector<16x256xf32>
    %23 = vector.extract_strided_slice %22 {offsets = [0, 0], sizes = [16, 128], strides = [1, 1]} : vector<16x256xf32> to vector<16x128xf32>
    %24 = vector.extract_strided_slice %22 {offsets = [0, 128], sizes = [16, 128], strides = [1, 1]} : vector<16x256xf32> to vector<16x128xf32>
    %cst_22 = arith.constant 0.0883883461 : f32
    %25 = vector.broadcast %cst_22 : f32 to vector<16x128xf32>
    %26 = arith.mulf %18, %25 : vector<16x128xf32>
    %27 = arith.truncf %26 : vector<16x128xf32> to vector<16x128xbf16>
    %28 = vector.shape_cast %27 : vector<16x128xbf16> to vector<2x8x128xbf16>
    %29 = arith.truncf %23 : vector<16x128xf32> to vector<16x128xbf16>
    %30 = vector.shape_cast %29 : vector<16x128xbf16> to vector<2x8x128xbf16>
    %31 = arith.truncf %24 : vector<16x128xf32> to vector<16x128xbf16>
    %32 = vector.shape_cast %31 : vector<16x128xbf16> to vector<2x8x128xbf16>
    %cst_23 = arith.constant dense<0.000000e+00> : vector<2x8x8xf32>
    %33 = tpu.matmul %28, %30, %cst_23 {dimension_numbers = #tpu.dot_dimension_numbers<[2], [2], [1], [1], [0, 0, 0, 1, 1, 1], [0], [0]>} : vector<2x8x128xbf16>, vector<2x8x128xbf16>, vector<2x8x8xf32> -> vector<2x8x8xf32>
    %cst_24 = arith.constant dense<0xFF800000> : vector<2x8xf32>
    %34 = vector.multi_reduction <maximumf>, %33, %cst_24 [2] : vector<2x8x8xf32> to vector<2x8xf32>
    %35 = vector.shape_cast %34 : vector<2x8xf32> to vector<2x8x1xf32>
    %36 = vector.broadcast %35 : vector<2x8x1xf32> to vector<2x8x8xf32>
    %37 = arith.subf %33, %36 : vector<2x8x8xf32>
    %38 = math.exp %37 : vector<2x8x8xf32>
    %cst_25 = arith.constant dense<0.000000e+00> : vector<2x8xf32>
    %39 = vector.multi_reduction <add>, %38, %cst_25 [2] : vector<2x8x8xf32> to vector<2x8xf32>
    %40 = vector.shape_cast %39 : vector<2x8xf32> to vector<2x8x1xf32>
    %41 = tpu.reciprocal %40 {approx = true} : vector<2x8x1xf32> -> vector<2x8x1xf32>
    %42 = vector.broadcast %41 : vector<2x8x1xf32> to vector<2x8x8xf32>
    %43 = arith.mulf %38, %42 : vector<2x8x8xf32>
    %44 = arith.truncf %43 : vector<2x8x8xf32> to vector<2x8x8xbf16>
    %cst_26 = arith.constant dense<0.000000e+00> : vector<2x8x128xf32>
    %45 = tpu.matmul %44, %32, %cst_26 {dimension_numbers = #tpu.dot_dimension_numbers<[2], [1], [1], [2], [0, 0, 0, 1, 1, 2], [0], [0]>} : vector<2x8x8xbf16>, vector<2x8x128xbf16>, vector<2x8x128xf32> -> vector<2x8x128xf32>
    %46 = vector.shape_cast %45 : vector<2x8x128xf32> to vector<16x128xf32>
    %47 = arith.truncf %46 : vector<16x128xf32> to vector<16x128xbf16>
    %c0_27 = arith.constant 0 : index
    %c0_28 = arith.constant 0 : index
    %48 = vector.load %arg5[%c0_27, %c0_28] : memref<128x128xbf16, #tpu.memory_space<vmem>>, vector<128x128xbf16>
    %cst_29 = arith.constant dense<0.000000e+00> : vector<16x128xf32>
    %49 = tpu.matmul %47, %48, %cst_29 {dimension_numbers = #tpu.dot_dimension_numbers<[1], [0], [0], [1], [0, 0, 1, 1], [], []>} : vector<16x128xbf16>, vector<128x128xbf16>, vector<16x128xf32> -> vector<16x128xf32>
    %50 = vector.broadcast %7 : vector<1x128xf32> to vector<16x128xf32>
    %51 = arith.addf %49, %50 : vector<16x128xf32>
    %52 = arith.addf %1, %51 : vector<16x128xf32>
    %cst_30 = arith.constant dense<0.000000e+00> : vector<16xf32>
    %53 = vector.multi_reduction <add>, %52, %cst_30 [1] : vector<16x128xf32> to vector<16xf32>
    %54 = vector.shape_cast %53 : vector<16xf32> to vector<16x1xf32>
    %cst_31 = arith.constant 1.280000e+02 : f32
    %55 = vector.broadcast %cst_31 : f32 to vector<16x1xf32>
    %56 = arith.divf %54, %55 : vector<16x1xf32>
    %57 = vector.broadcast %56 : vector<16x1xf32> to vector<16x128xf32>
    %58 = arith.subf %52, %57 : vector<16x128xf32>
    %59 = vector.broadcast %56 : vector<16x1xf32> to vector<16x128xf32>
    %60 = arith.subf %52, %59 : vector<16x128xf32>
    %61 = arith.mulf %58, %60 : vector<16x128xf32>
    %cst_32 = arith.constant dense<0.000000e+00> : vector<16xf32>
    %62 = vector.multi_reduction <add>, %61, %cst_32 [1] : vector<16x128xf32> to vector<16xf32>
    %63 = vector.shape_cast %62 : vector<16xf32> to vector<16x1xf32>
    %cst_33 = arith.constant 1.280000e+02 : f32
    %64 = vector.broadcast %cst_33 : f32 to vector<16x1xf32>
    %65 = arith.divf %63, %64 : vector<16x1xf32>
    %66 = vector.broadcast %56 : vector<16x1xf32> to vector<16x128xf32>
    %67 = arith.subf %52, %66 : vector<16x128xf32>
    %cst_34 = arith.constant 9.99999974E-6 : f32
    %68 = vector.broadcast %cst_34 : f32 to vector<16x1xf32>
    %69 = arith.addf %65, %68 : vector<16x1xf32>
    %70 = math.rsqrt %69 : vector<16x1xf32>
    %71 = vector.broadcast %70 : vector<16x1xf32> to vector<16x128xf32>
    %72 = arith.mulf %67, %71 : vector<16x128xf32>
    %73 = vector.broadcast %8 : vector<1x128xf32> to vector<16x128xf32>
    %74 = arith.mulf %72, %73 : vector<16x128xf32>
    %75 = vector.broadcast %9 : vector<1x128xf32> to vector<16x128xf32>
    %76 = arith.addf %74, %75 : vector<16x128xf32>
    %77 = arith.truncf %76 : vector<16x128xf32> to vector<16x128xbf16>
    %c0_35 = arith.constant 0 : index
    %c0_36 = arith.constant 0 : index
    %78 = vector.load %arg6[%c0_35, %c0_36] : memref<128x256xbf16, #tpu.memory_space<vmem>>, vector<128x256xbf16>
    %cst_37 = arith.constant dense<0.000000e+00> : vector<16x256xf32>
    %79 = tpu.matmul %77, %78, %cst_37 {dimension_numbers = #tpu.dot_dimension_numbers<[1], [0], [0], [1], [0, 0, 1, 1], [], []>} : vector<16x128xbf16>, vector<128x256xbf16>, vector<16x256xf32> -> vector<16x256xf32>
    %80 = vector.broadcast %14 : vector<1x256xf32> to vector<16x256xf32>
    %81 = arith.addf %79, %80 : vector<16x256xf32>
    %cst_38 = arith.constant 0.000000e+00 : f32
    %82 = vector.broadcast %cst_38 : f32 to vector<16x256xf32>
    %83 = arith.maximumf %81, %82 : vector<16x256xf32>
    %84 = arith.truncf %83 : vector<16x256xf32> to vector<16x256xbf16>
    %c0_39 = arith.constant 0 : index
    %c0_40 = arith.constant 0 : index
    %85 = vector.load %arg7[%c0_39, %c0_40] : memref<256x128xbf16, #tpu.memory_space<vmem>>, vector<256x128xbf16>
    %cst_41 = arith.constant dense<0.000000e+00> : vector<16x128xf32>
    %86 = tpu.matmul %84, %85, %cst_41 {dimension_numbers = #tpu.dot_dimension_numbers<[1], [0], [0], [1], [0, 0, 1, 1], [], []>} : vector<16x256xbf16>, vector<256x128xbf16>, vector<16x128xf32> -> vector<16x128xf32>
    %87 = vector.broadcast %10 : vector<1x128xf32> to vector<16x128xf32>
    %88 = arith.addf %86, %87 : vector<16x128xf32>
    %89 = arith.addf %76, %88 : vector<16x128xf32>
    %cst_42 = arith.constant dense<0.000000e+00> : vector<16xf32>
    %90 = vector.multi_reduction <add>, %89, %cst_42 [1] : vector<16x128xf32> to vector<16xf32>
    %91 = vector.shape_cast %90 : vector<16xf32> to vector<16x1xf32>
    %cst_43 = arith.constant 1.280000e+02 : f32
    %92 = vector.broadcast %cst_43 : f32 to vector<16x1xf32>
    %93 = arith.divf %91, %92 : vector<16x1xf32>
    %94 = vector.broadcast %93 : vector<16x1xf32> to vector<16x128xf32>
    %95 = arith.subf %89, %94 : vector<16x128xf32>
    %96 = vector.broadcast %93 : vector<16x1xf32> to vector<16x128xf32>
    %97 = arith.subf %89, %96 : vector<16x128xf32>
    %98 = arith.mulf %95, %97 : vector<16x128xf32>
    %cst_44 = arith.constant dense<0.000000e+00> : vector<16xf32>
    %99 = vector.multi_reduction <add>, %98, %cst_44 [1] : vector<16x128xf32> to vector<16xf32>
    %100 = vector.shape_cast %99 : vector<16xf32> to vector<16x1xf32>
    %cst_45 = arith.constant 1.280000e+02 : f32
    %101 = vector.broadcast %cst_45 : f32 to vector<16x1xf32>
    %102 = arith.divf %100, %101 : vector<16x1xf32>
    %103 = vector.broadcast %93 : vector<16x1xf32> to vector<16x128xf32>
    %104 = arith.subf %89, %103 : vector<16x128xf32>
    %cst_46 = arith.constant 9.99999974E-6 : f32
    %105 = vector.broadcast %cst_46 : f32 to vector<16x1xf32>
    %106 = arith.addf %102, %105 : vector<16x1xf32>
    %107 = math.rsqrt %106 : vector<16x1xf32>
    %108 = vector.broadcast %107 : vector<16x1xf32> to vector<16x128xf32>
    %109 = arith.mulf %104, %108 : vector<16x128xf32>
    %110 = vector.broadcast %11 : vector<1x128xf32> to vector<16x128xf32>
    %111 = arith.mulf %109, %110 : vector<16x128xf32>
    %112 = vector.broadcast %12 : vector<1x128xf32> to vector<16x128xf32>
    %113 = arith.addf %111, %112 : vector<16x128xf32>
    %114 = vector.shape_cast %113 : vector<16x128xf32> to vector<2x8x128xf32>
    %c0_47 = arith.constant 0 : index
    %c0_48 = arith.constant 0 : index
    %c0_49 = arith.constant 0 : index
    %115 = vector.load %arg10[%c0_47, %c0_48, %c0_49] : memref<2x8x128xf32, #tpu.memory_space<vmem>>, vector<2x8x128xf32>
    tpu.vector_store %arg10[%c0_47, %c0_48, %c0_49], %114 {strides = array<i32>} : memref<2x8x128xf32, #tpu.memory_space<vmem>>, vector<2x8x128xf32>,
    return
  }
  func.func @transform_0(%arg0: i32) -> (i32, i32, i32) {
    %c0_i32 = arith.constant 0 : i32
    %c0_i32_0 = arith.constant 0 : i32
    %c0_i32_1 = arith.constant 0 : i32
    return %arg0, %c0_i32, %c0_i32_0 : i32, i32, i32
  }
  func.func @transform_1(%arg0: i32) -> (i32, i32, i32) {
    %c0_i32 = arith.constant 0 : i32
    %c0_i32_0 = arith.constant 0 : i32
    %c0_i32_1 = arith.constant 0 : i32
    return %arg0, %c0_i32, %c0_i32_0 : i32, i32, i32
  }
  func.func @transform_2(%arg0: i32) -> (i32, i32) {
    %c0_i32 = arith.constant 0 : i32
    %c0_i32_0 = arith.constant 0 : i32
    %c0_i32_1 = arith.constant 0 : i32
    return %c0_i32, %c0_i32_0 : i32, i32
  }
  func.func @transform_3(%arg0: i32) -> (i32, i32) {
    %c0_i32 = arith.constant 0 : i32
    %c0_i32_0 = arith.constant 0 : i32
    %c0_i32_1 = arith.constant 0 : i32
    return %c0_i32, %c0_i32_0 : i32, i32
  }
  func.func @transform_4(%arg0: i32) -> (i32, i32) {
    %c0_i32 = arith.constant 0 : i32
    %c0_i32_0 = arith.constant 0 : i32
    %c0_i32_1 = arith.constant 0 : i32
    return %c0_i32, %c0_i32_0 : i32, i32
  }
  func.func @transform_5(%arg0: i32) -> (i32, i32) {
    %c0_i32 = arith.constant 0 : i32
    %c0_i32_0 = arith.constant 0 : i32
    %c0_i32_1 = arith.constant 0 : i32
    return %c0_i32, %c0_i32_0 : i32, i32
  }
  func.func @transform_6(%arg0: i32) -> (i32, i32) {
    %c0_i32 = arith.constant 0 : i32
    %c0_i32_0 = arith.constant 0 : i32
    %c0_i32_1 = arith.constant 0 : i32
    return %c0_i32, %c0_i32_0 : i32, i32
  }
  func.func @transform_7(%arg0: i32) -> (i32, i32) {
    %c0_i32 = arith.constant 0 : i32
    %c0_i32_0 = arith.constant 0 : i32
    %c0_i32_1 = arith.constant 0 : i32
    return %c0_i32, %c0_i32_0 : i32, i32
  }
  func.func @transform_8(%arg0: i32) -> (i32, i32) {
    %c0_i32 = arith.constant 0 : i32
    %c0_i32_0 = arith.constant 0 : i32
    %c0_i32_1 = arith.constant 0 : i32
    return %c0_i32, %c0_i32_0 : i32, i32
  }
  func.func @transform_9(%arg0: i32) -> (i32, i32, i32) {
    %c0_i32 = arith.constant 0 : i32
    %c0_i32_0 = arith.constant 0 : i32
    %c0_i32_1 = arith.constant 0 : i32
    return %arg0, %c0_i32, %c0_i32_0 : i32, i32, i32
  }
}

</mosaic_0001>

<llo_original>
// kernel: tpu_custom_call.1
$region0: #{tpu_custom_call.1}
  #allocation0 [shape = 'u32[]', space=smem, size = 0x4, offset = 0x4, fixed_abs, tag = 'smem constant byte address 0x4 - core index']
  #allocation1 [shape = 'u32[144,128]{1,0:T(1,128)}', space=vmem, size = 0x12000, scoped, tag = 'internal scratch']
  %s0 = inlined_call_operand.hbm [shape: f32[4,8,128], index: 0, kind: input, shape index: {}]
  %s1 = inlined_call_operand.hbm [shape: f32[4,8,128], index: 1, kind: input, shape index: {}]
  %s2 = inlined_call_operand.hbm [shape: bf16[128,128], index: 2, kind: input, shape index: {}]
  %s3 = inlined_call_operand.hbm [shape: bf16[128,256], index: 3, kind: input, shape index: {}]
  %s4 = inlined_call_operand.hbm [shape: bf16[128,128], index: 4, kind: input, shape index: {}]
  %s5 = inlined_call_operand.hbm [shape: bf16[128,256], index: 5, kind: input, shape index: {}]
  %s6 = inlined_call_operand.hbm [shape: bf16[256,128], index: 6, kind: input, shape index: {}]
  %s7 = inlined_call_operand.vmem [shape: f32[8,128], index: 7, kind: input, shape index: {}]
  %s8 = inlined_call_operand.vmem [shape: f32[2,256], index: 8, kind: input, shape index: {}]
  %s9 = inlined_call_operand.hbm [shape: f32[4,8,128], index: 9, kind: output, shape index: {}]
  %s10 = sld [smem:[#allocation0]]
  $region97: #{tpu_custom_call.1} parent=0
    _
  %s12 = ssub.s32 1, %s10
  %s13 = scalar_select 0, %s12, %s10
  $region1: #{tpu_custom_call.1} parent=0
    #allocation2 [shape = 'u8[16384]{0}', space=vmem, size = 0x4000, scoped, tag = 'input window, operand 0']
    #allocation3 [shape = 's32[2]{0}', space=sflag, size = 0x8, scoped, tag = 'scoped memory for tpu_custom_call.1']
    #allocation4 [shape = 's32[2]{0}', space=sflag, size = 0x8, scoped, tag = 'scoped memory for tpu_custom_call.1']
    #allocation5 [shape = 'u8[16384]{0}', space=vmem, size = 0x4000, scoped, tag = 'input window, operand 1']
    #allocation6 [shape = 's32[2]{0}', space=sflag, size = 0x8, scoped, tag = 'scoped memory for tpu_custom_call.1']
    #allocation7 [shape = 'u8[32768]{0}', space=vmem, size = 0x8000, scoped, tag = 'input window, operand 2, single buffered']
    #allocation8 [shape = 'u8[65536]{0}', space=vmem, size = 0x10000, scoped, tag = 'input window, operand 3, single buffered']
    #allocation9 [shape = 's32[1]{0}', space=sflag, size = 0x4, scoped, tag = 'scoped memory for tpu_custom_call.1']
    #allocation10 [shape = 'u8[32768]{0}', space=vmem, size = 0x8000, scoped, tag = 'input window, operand 4, single buffered']
    #allocation11 [shape = 'u8[65536]{0}', space=vmem, size = 0x10000, scoped, tag = 'input window, operand 5, single buffered']
    #allocation12 [shape = 's32[1]{0}', space=sflag, size = 0x4, scoped, tag = 'scoped memory for tpu_custom_call.1']
    #allocation13 [shape = 'u8[65536]{0}', space=vmem, size = 0x10000, scoped, tag = 'input window, operand 6, single buffered']
    #allocation14 [shape = 'u8[16384]{0}', space=vmem, size = 0x4000, scoped, tag = 'output window, operand 0']
    %14 = vsyncpa [#allocation3], 0
    %s15 = scalar_lea.sflag [#allocation3], 1
    %16 = vsyncpa %s15, 0
    %17 = vsyncpa [#allocation6], 0
    %s18 = scalar_lea.sflag [#allocation6], 1
    %19 = vsyncpa %s18, 0
    %20 = vsyncpa [#allocation9], 0
    %21 = vsyncpa [#allocation12], 0
    %22 = vsyncpa [#allocation4], 0
    %s23 = scalar_lea.sflag [#allocation4], 1
    %24 = vsyncpa %s23, 0
    loop: start=0, step=1, limit=4
    $region2: #{tpu_custom_call.1} parent=1 // loop_pre_header
      _
    $region3: #{tpu_custom_call.1} parent=1 // loop_header
      %s26 = sphi 0, %s30
      %p27 = scmp.ge.s32.totalorder %s26, 4
      %s36 = sphi 0, %s38
      %s39 = sphi 0, %s36
      %s40 = sphi 0, %s39
      %s56 = sphi 0, %s40
      %s62 = sphi 0, %s64
      %s65 = sphi 0, %s62
      %s66 = sphi 0, %s65
      %s82 = sphi 0, %s66
      %s86 = sphi 0, %s86
      %s88 = sphi 0, %s86
      %s89 = sphi 0, %s88
      %s103 = sphi 0, %s89
      %s107 = sphi 0, %s107
      %s109 = sphi 0, %s107
      %s110 = sphi 0, %s109
      %s124 = sphi 0, %s110
      %s128 = sphi 0, %s128
      %s130 = sphi 0, %s128
      %s131 = sphi 0, %s130
      %s145 = sphi 0, %s131
      %s149 = sphi 0, %s149
      %s151 = sphi 0, %s149
      %s152 = sphi 0, %s151
      %s166 = sphi 0, %s152
      %s170 = sphi 0, %s170
      %s172 = sphi 0, %s170
      %s173 = sphi 0, %s172
      %s187 = sphi 0, %s173
      %s191 = sphi 0, %s191
      %s193 = sphi 0, %s191
      %s194 = sphi 0, %s193
      %s208 = sphi 0, %s194
      %s212 = sphi 0, %s212
      %s214 = sphi 0, %s212
      %s215 = sphi 0, %s214
      %s229 = sphi 0, %s215
      %s235 = sphi 0, %s237
      %s238 = sphi 0, %s235
      %s239 = sphi 0, %s238
      %s255 = sphi 0, %s239
    $region4: #{tpu_custom_call.1} parent=1 // loop_header_branch
      %29 = sbr.rel (%p27) target = $region8
    $region5: #{tpu_custom_call.1} parent=1 // loop_body
      %s31 = ssub.s32 %s26, 1
      %s32 = ssub.s32 %s26, 2
      %s33 = sadd.s32 %s26, 1
      %s34 = ssub.s32 %s26, %s33
      %p35 = scmp.eq.s32.totalorder %s34, 0
      %s37 = sadd.s32 %s36, 1
      %s38 = scalar_select %p35, %s36, %s37
      %p41 = pneg %p35
      %p42 = scmp.eq.s32.totalorder %s26, 1
      %p43 = por %p41, %p42
      %p44 = scmp.ne.s32.totalorder %s36, %s39
      %p45 = scmp.eq.s32.totalorder %s26, 0
      %p46 = por %p44, %p45
      %p47 = scmp.ne.s32.totalorder %s36, %s39
      %p48 = scmp.eq.s32.totalorder %s31, 1
      %p49 = por %p47, %p48
      %p50 = scmp.ne.s32.totalorder %s39, %s40
      %p51 = scmp.eq.s32.totalorder %s31, 0
      %p52 = por %p50, %p51
      %p53 = scmp.ne.s32.totalorder %s39, %s40
      %p54 = scmp.eq.s32.totalorder %s32, 1
      %p55 = por %p53, %p54
      %p57 = scmp.ne.s32.totalorder %s40, %s56
      %p58 = scmp.eq.s32.totalorder %s32, 0
      %p59 = por %p57, %p58
      %s60 = ssub.s32 %s26, %s33
      %p61 = scmp.eq.s32.totalorder %s60, 0
      %s63 = sadd.s32 %s62, 1
      %s64 = scalar_select %p61, %s62, %s63
      %p67 = pneg %p61
      %p68 = scmp.eq.s32.totalorder %s26, 1
      %p69 = por %p67, %p68
      %p70 = scmp.ne.s32.totalorder %s62, %s65
      %p71 = scmp.eq.s32.totalorder %s26, 0
      %p72 = por %p70, %p71
      %p73 = scmp.ne.s32.totalorder %s62, %s65
      %p74 = scmp.eq.s32.totalorder %s31, 1
      %p75 = por %p73, %p74
      %p76 = scmp.ne.s32.totalorder %s65, %s66
      %p77 = scmp.eq.s32.totalorder %s31, 0
      %p78 = por %p76, %p77
      %p79 = scmp.ne.s32.totalorder %s65, %s66
      %p80 = scmp.eq.s32.totalorder %s32, 1
      %p81 = por %p79, %p80
      %p83 = scmp.ne.s32.totalorder %s66, %s82
      %p84 = scmp.eq.s32.totalorder %s32, 0
      %p85 = por %p83, %p84
      %s87 = sadd.s32 %s86, 1
      %p90 = scmp.eq.s32.totalorder %s26, 1
      %p91 = scmp.ne.s32.totalorder %s86, %s88
      %p92 = scmp.eq.s32.totalorder %s26, 0
      %p93 = por %p91, %p92
      %p94 = scmp.ne.s32.totalorder %s86, %s88
      %p95 = scmp.eq.s32.totalorder %s31, 1
      %p96 = por %p94, %p95
      %p97 = scmp.ne.s32.totalorder %s88, %s89
      %p98 = scmp.eq.s32.totalorder %s31, 0
      %p99 = por %p97, %p98
      %p100 = scmp.ne.s32.totalorder %s88, %s89
      %p101 = scmp.eq.s32.totalorder %s32, 1
      %p102 = por %p100, %p101
      %p104 = scmp.ne.s32.totalorder %s89, %s103
      %p105 = scmp.eq.s32.totalorder %s32, 0
      %p106 = por %p104, %p105
      %s108 = sadd.s32 %s107, 1
      %p111 = scmp.eq.s32.totalorder %s26, 1
      %p112 = scmp.ne.s32.totalorder %s107, %s109
      %p113 = scmp.eq.s32.totalorder %s26, 0
      %p114 = por %p112, %p113
      %p115 = scmp.ne.s32.totalorder %s107, %s109
      %p116 = scmp.eq.s32.totalorder %s31, 1
      %p117 = por %p115, %p116
      %p118 = scmp.ne.s32.totalorder %s109, %s110
      %p119 = scmp.eq.s32.totalorder %s31, 0
      %p120 = por %p118, %p119
      %p121 = scmp.ne.s32.totalorder %s109, %s110
      %p122 = scmp.eq.s32.totalorder %s32, 1
      %p123 = por %p121, %p122
      %p125 = scmp.ne.s32.totalorder %s110, %s124
      %p126 = scmp.eq.s32.totalorder %s32, 0
      %p127 = por %p125, %p126
      %s129 = sadd.s32 %s128, 1
      %p132 = scmp.eq.s32.totalorder %s26, 1
      %p133 = scmp.ne.s32.totalorder %s128, %s130
      %p134 = scmp.eq.s32.totalorder %s26, 0
      %p135 = por %p133, %p134
      %p136 = scmp.ne.s32.totalorder %s128, %s130
      %p137 = scmp.eq.s32.totalorder %s31, 1
      %p138 = por %p136, %p137
      %p139 = scmp.ne.s32.totalorder %s130, %s131
      %p140 = scmp.eq.s32.totalorder %s31, 0
      %p141 = por %p139, %p140
      %p142 = scmp.ne.s32.totalorder %s130, %s131
      %p143 = scmp.eq.s32.totalorder %s32, 1
      %p144 = por %p142, %p143
      %p146 = scmp.ne.s32.totalorder %s131, %s145
      %p147 = scmp.eq.s32.totalorder %s32, 0
      %p148 = por %p146, %p147
      %s150 = sadd.s32 %s149, 1
      %p153 = scmp.eq.s32.totalorder %s26, 1
      %p154 = scmp.ne.s32.totalorder %s149, %s151
      %p155 = scmp.eq.s32.totalorder %s26, 0
      %p156 = por %p154, %p155
      %p157 = scmp.ne.s32.totalorder %s149, %s151
      %p158 = scmp.eq.s32.totalorder %s31, 1
      %p159 = por %p157, %p158
      %p160 = scmp.ne.s32.totalorder %s151, %s152
      %p161 = scmp.eq.s32.totalorder %s31, 0
      %p162 = por %p160, %p161
      %p163 = scmp.ne.s32.totalorder %s151, %s152
      %p164 = scmp.eq.s32.totalorder %s32, 1
      %p165 = por %p163, %p164
      %p167 = scmp.ne.s32.totalorder %s152, %s166
      %p168 = scmp.eq.s32.totalorder %s32, 0
      %p169 = por %p167, %p168
      %s171 = sadd.s32 %s170, 1
      %p174 = scmp.eq.s32.totalorder %s26, 1
      %p175 = scmp.ne.s32.totalorder %s170, %s172
      %p176 = scmp.eq.s32.totalorder %s26, 0
      %p177 = por %p175, %p176
      %p178 = scmp.ne.s32.totalorder %s170, %s172
      %p179 = scmp.eq.s32.totalorder %s31, 1
      %p180 = por %p178, %p179
      %p181 = scmp.ne.s32.totalorder %s172, %s173
      %p182 = scmp.eq.s32.totalorder %s31, 0
      %p183 = por %p181, %p182
      %p184 = scmp.ne.s32.totalorder %s172, %s173
      %p185 = scmp.eq.s32.totalorder %s32, 1
      %p186 = por %p184, %p185
      %p188 = scmp.ne.s32.totalorder %s173, %s187
      %p189 = scmp.eq.s32.totalorder %s32, 0
      %p190 = por %p188, %p189
      %s192 = sadd.s32 %s191, 1
      %p195 = scmp.eq.s32.totalorder %s26, 1
      %p196 = scmp.ne.s32.totalorder %s191, %s193
      %p197 = scmp.eq.s32.totalorder %s26, 0
      %p198 = por %p196, %p197
      %p199 = scmp.ne.s32.totalorder %s191, %s193
      %p200 = scmp.eq.s32.totalorder %s31, 1
      %p201 = por %p199, %p200
      %p202 = scmp.ne.s32.totalorder %s193, %s194
      %p203 = scmp.eq.s32.totalorder %s31, 0
      %p204 = por %p202, %p203
      %p205 = scmp.ne.s32.totalorder %s193, %s194
      %p206 = scmp.eq.s32.totalorder %s32, 1
      %p207 = por %p205, %p206
      %p209 = scmp.ne.s32.totalorder %s194, %s208
      %p210 = scmp.eq.s32.totalorder %s32, 0
      %p211 = por %p209, %p210
      %s213 = sadd.s32 %s212, 1
      %p216 = scmp.eq.s32.totalorder %s26, 1
      %p217 = scmp.ne.s32.totalorder %s212, %s214
      %p218 = scmp.eq.s32.totalorder %s26, 0
      %p219 = por %p217, %p218
      %p220 = scmp.ne.s32.totalorder %s212, %s214
      %p221 = scmp.eq.s32.totalorder %s31, 1
      %p222 = por %p220, %p221
      %p223 = scmp.ne.s32.totalorder %s214, %s215
      %p224 = scmp.eq.s32.totalorder %s31, 0
      %p225 = por %p223, %p224
      %p226 = scmp.ne.s32.totalorder %s214, %s215
      %p227 = scmp.eq.s32.totalorder %s32, 1
      %p228 = por %p226, %p227
      %p230 = scmp.ne.s32.totalorder %s215, %s229
      %p231 = scmp.eq.s32.totalorder %s32, 0
      %p232 = por %p230, %p231
      %s233 = ssub.s32 %s26, %s33
      %p234 = scmp.eq.s32.totalorder %s233, 0
      %s236 = sadd.s32 %s235, 1
      %s237 = scalar_select %p234, %s235, %s236
      %p240 = pneg %p234
      %p241 = scmp.eq.s32.totalorder %s26, 1
      %p242 = por %p240, %p241
      %p243 = scmp.ne.s32.totalorder %s235, %s238
      %p244 = scmp.eq.s32.totalorder %s26, 0
      %p245 = por %p243, %p244
      %p246 = scmp.ne.s32.totalorder %s235, %s238
      %p247 = scmp.eq.s32.totalorder %s31, 1
      %p248 = por %p246, %p247
      %p249 = scmp.ne.s32.totalorder %s238, %s239
      %p250 = scmp.eq.s32.totalorder %s31, 0
      %p251 = por %p249, %p250
      %p252 = scmp.ne.s32.totalorder %s238, %s239
      %p253 = scmp.eq.s32.totalorder %s32, 1
      %p254 = por %p252, %p253
      %p256 = scmp.ne.s32.totalorder %s239, %s255
      %p257 = scmp.eq.s32.totalorder %s32, 0
      %p258 = por %p256, %p257
      %p259 = scmp.le.s32.totalorder 1, %s26
      %p260 = scmp.lt.s32.totalorder %s26, 3
      %p261 = pnand %p259, %p260
      %p262 = pneg %p261
      // Predicated region
      $region9: #{tpu_custom_call.1} parent=5 // pred_check
        _
      $region10: #{tpu_custom_call.1} parent=5 // pred_check_branch
        %264 = sbr.rel (%p261) target = $region12
      $region11: #{tpu_custom_call.1} parent=5 // pred_region
        %s265 = ssub.s32 %s26, 1
        // Predicated region
        $region13: #{tpu_custom_call.1} parent=11 // pred_check
          %p266 = pneg %p99
        $region14: #{tpu_custom_call.1} parent=11 // pred_check_branch
          %268 = sbr.rel (%p266) target = $region16
        $region15: #{tpu_custom_call.1} parent=11 // pred_region
          %s270 = ssub.s32 1024, 1024
          %271 = vsyncadd [#allocation6], %s270
          %s272 = sshll.u32 [#allocation7], 4
          %s273 = int_to_ptr.vmem [resolvable:$true] %s272
          %278 = dma.hbm_to_vmem [thread:$0]  %s2, 1024, %s273, [#allocation6], 64, 64, 4
        $region16: #{tpu_custom_call.1} parent=11 // pred_fallthru
          _
        // Predicated region
        $region17: #{tpu_custom_call.1} parent=11 // pred_check
          %p279 = pneg %p120
        $region18: #{tpu_custom_call.1} parent=11 // pred_check_branch
          %281 = sbr.rel (%p279) target = $region20
        $region19: #{tpu_custom_call.1} parent=11 // pred_region
          %s283 = ssub.s32 2048, 2048
          %284 = vsyncadd [#allocation9], %s283
          %s285 = sshll.u32 [#allocation8], 4
          %s286 = int_to_ptr.vmem [resolvable:$true] %s285
          %291 = dma.hbm_to_vmem [thread:$0]  %s3, 2048, %s286, [#allocation9], 128, 128, 8
        $region20: #{tpu_custom_call.1} parent=11 // pred_fallthru
          _
        // Predicated region
        $region21: #{tpu_custom_call.1} parent=11 // pred_check
          %p292 = pneg %p141
        $region22: #{tpu_custom_call.1} parent=11 // pred_check_branch
          %294 = sbr.rel (%p292) target = $region24
        $region23: #{tpu_custom_call.1} parent=11 // pred_region
          %s296 = ssub.s32 1024, 1024
          %297 = vsyncadd [#allocation9], %s296
          %s298 = sshll.u32 [#allocation10], 4
          %s299 = int_to_ptr.vmem [resolvable:$true] %s298
          %304 = dma.hbm_to_vmem [thread:$0]  %s4, 1024, %s299, [#allocation9], 64, 64, 4
        $region24: #{tpu_custom_call.1} parent=11 // pred_fallthru
          _
        // Predicated region
        $region25: #{tpu_custom_call.1} parent=11 // pred_check
          %p305 = pneg %p162
        $region26: #{tpu_custom_call.1} parent=11 // pred_check_branch
          %307 = sbr.rel (%p305) target = $region28
        $region27: #{tpu_custom_call.1} parent=11 // pred_region
          %s309 = ssub.s32 2048, 2048
          %310 = vsyncadd [#allocation12], %s309
          %s311 = sshll.u32 [#allocation11], 4
          %s312 = int_to_ptr.vmem [resolvable:$true] %s311
          %317 = dma.hbm_to_vmem [thread:$0]  %s5, 2048, %s312, [#allocation12], 128, 128, 8
        $region28: #{tpu_custom_call.1} parent=11 // pred_fallthru
          _
        // Predicated region
        $region29: #{tpu_custom_call.1} parent=11 // pred_check
          %p318 = pneg %p183
        $region30: #{tpu_custom_call.1} parent=11 // pred_check_branch
          %320 = sbr.rel (%p318) target = $region32
        $region31: #{tpu_custom_call.1} parent=11 // pred_region
          %s322 = ssub.s32 2048, 2048
          %323 = vsyncadd [#allocation12], %s322
          %s324 = sshll.u32 [#allocation13], 4
          %s325 = int_to_ptr.vmem [resolvable:$true] %s324
          %330 = dma.hbm_to_vmem [thread:$0]  %s6, 2048, %s325, [#allocation12], 64, 64, 4
        $region32: #{tpu_custom_call.1} parent=11 // pred_fallthru
          _
        // Predicated region
        $region33: #{tpu_custom_call.1} parent=11 // pred_check
          %p331 = pneg %p204
        $region34: #{tpu_custom_call.1} parent=11 // pred_check_branch
          %333 = sbr.rel (%p331) target = $region36
        $region35: #{tpu_custom_call.1} parent=11 // pred_region
          _
        $region36: #{tpu_custom_call.1} parent=11 // pred_fallthru
          _
        // Predicated region
        $region37: #{tpu_custom_call.1} parent=11 // pred_check
          %p334 = pneg %p225
        $region38: #{tpu_custom_call.1} parent=11 // pred_check_branch
          %336 = sbr.rel (%p334) target = $region40
        $region39: #{tpu_custom_call.1} parent=11 // pred_region
          _
        $region40: #{tpu_custom_call.1} parent=11 // pred_fallthru
          _
      $region12: #{tpu_custom_call.1} parent=5 // pred_fallthru
        _
      %p337 = scmp.lt.s32.totalorder %s26, 2
      // Predicated region
      $region41: #{tpu_custom_call.1} parent=5 // pred_check
        %p338 = pneg %p337
      $region42: #{tpu_custom_call.1} parent=5 // pred_check_branch
        %340 = sbr.rel (%p338) target = $region44
      $region43: #{tpu_custom_call.1} parent=5 // pred_region
        // Predicated region
        $region45: #{tpu_custom_call.1} parent=43 // pred_check
          %p341 = pneg %p46
        $region46: #{tpu_custom_call.1} parent=43 // pred_check_branch
          %343 = sbr.rel (%p341) target = $region48
        $region47: #{tpu_custom_call.1} parent=43 // pred_region
          %s344 = sand.u32 %s36, 1
          %s345 = scalar_lea.sflag [#allocation3], %s344
          %s346 = sand.u32 %s36, 1
          %s347 = smul.addr %s346, 16
          %s348 = scalar_lea.vmem [#allocation2], %s347
          %s349 = smul.u32 2, %s26
          %s351 = ssub.s32 256, 256
          %352 = vsyncadd %s345, %s351
          %s353 = smul.addr %s349, 128
          %s354 = scalar_lea.hbm %s0, %s353
          %s355 = sshll.u32 %s348, 4
          %s356 = int_to_ptr.vmem [resolvable:$true] %s355
          %361 = dma.hbm_to_vmem [thread:$0]  %s354, 256, %s356, %s345, 128, 128, 8
        $region48: #{tpu_custom_call.1} parent=43 // pred_fallthru
          _
        // Predicated region
        $region49: #{tpu_custom_call.1} parent=43 // pred_check
          %p362 = pneg %p72
        $region50: #{tpu_custom_call.1} parent=43 // pred_check_branch
          %364 = sbr.rel (%p362) target = $region52
        $region51: #{tpu_custom_call.1} parent=43 // pred_region
          %s365 = sand.u32 %s26, 1
          %s366 = scalar_lea.sflag [#allocation6], %s365
          %s367 = sand.u32 %s62, 1
          %s368 = smul.addr %s367, 16
          %s369 = scalar_lea.vmem [#allocation5], %s368
          %s370 = smul.u32 2, %s26
          %s372 = ssub.s32 256, 256
          %373 = vsyncadd %s366, %s372
          %s374 = smul.addr %s370, 128
          %s375 = scalar_lea.hbm %s1, %s374
          %s376 = sshll.u32 %s369, 4
          %s377 = int_to_ptr.vmem [resolvable:$true] %s376
          %382 = dma.hbm_to_vmem [thread:$0]  %s375, 256, %s377, %s366, 128, 128, 8
        $region52: #{tpu_custom_call.1} parent=43 // pred_fallthru
          _
      $region44: #{tpu_custom_call.1} parent=5 // pred_fallthru
        _
      %p383 = scmp.le.s32.totalorder 1, %s26
      %p384 = scmp.lt.s32.totalorder %s26, 3
      %p385 = pnand %p383, %p384
      %p386 = pneg %p385
      // Predicated region
      $region53: #{tpu_custom_call.1} parent=5 // pred_check
        _
      $region54: #{tpu_custom_call.1} parent=5 // pred_check_branch
        %388 = sbr.rel (%p385) target = $region56
      $region55: #{tpu_custom_call.1} parent=5 // pred_region
        %s389 = ssub.s32 %s26, 1
        %s390 = sand.u32 %s39, 1
        %s391 = scalar_lea.sflag [#allocation3], %s390
        %s392 = sand.u32 %s39, 1
        %s393 = smul.addr %s392, 16
        %s394 = scalar_lea.vmem [#allocation2], %s393
        // Predicated region
        $region57: #{tpu_custom_call.1} parent=55 // pred_check
          %p395 = pneg %p52
        $region58: #{tpu_custom_call.1} parent=55 // pred_check_branch
          %397 = sbr.rel (%p395) target = $region60
        $region59: #{tpu_custom_call.1} parent=55 // pred_region
          %398 = dma.done %s391, 256
        $region60: #{tpu_custom_call.1} parent=55 // pred_fallthru
          _
        %s399 = sand.u32 %s31, 1
        %s400 = scalar_lea.sflag [#allocation6], %s399
        %s401 = sand.u32 %s65, 1
        %s402 = smul.addr %s401, 16
        %s403 = scalar_lea.vmem [#allocation5], %s402
        // Predicated region
        $region61: #{tpu_custom_call.1} parent=55 // pred_check
          %p404 = pneg %p78
        $region62: #{tpu_custom_call.1} parent=55 // pred_check_branch
          %406 = sbr.rel (%p404) target = $region64
        $region63: #{tpu_custom_call.1} parent=55 // pred_region
          %407 = dma.done %s400, 256
        $region64: #{tpu_custom_call.1} parent=55 // pred_fallthru
          _
        // Predicated region
        $region65: #{tpu_custom_call.1} parent=55 // pred_check
          %p408 = pneg %p99
        $region66: #{tpu_custom_call.1} parent=55 // pred_check_branch
          %410 = sbr.rel (%p408) target = $region68
        $region67: #{tpu_custom_call.1} parent=55 // pred_region
          %411 = dma.done [#allocation6], 1024
        $region68: #{tpu_custom_call.1} parent=55 // pred_fallthru
          _
        // Predicated region
        $region69: #{tpu_custom_call.1} parent=55 // pred_check
          %p412 = pneg %p120
        $region70: #{tpu_custom_call.1} parent=55 // pred_check_branch
          %414 = sbr.rel (%p412) target = $region72
        $region71: #{tpu_custom_call.1} parent=55 // pred_region
          %415 = dma.done [#allocation9], 2048
        $region72: #{tpu_custom_call.1} parent=55 // pred_fallthru
          _
        // Predicated region
        $region73: #{tpu_custom_call.1} parent=55 // pred_check
          %p416 = pneg %p141
        $region74: #{tpu_custom_call.1} parent=55 // pred_check_branch
          %418 = sbr.rel (%p416) target = $region76
        $region75: #{tpu_custom_call.1} parent=55 // pred_region
          %419 = dma.done [#allocation9], 1024
        $region76: #{tpu_custom_call.1} parent=55 // pred_fallthru
          _
        // Predicated region
        $region77: #{tpu_custom_call.1} parent=55 // pred_check
          %p420 = pneg %p162
        $region78: #{tpu_custom_call.1} parent=55 // pred_check_branch
          %422 = sbr.rel (%p420) target = $region80
        $region79: #{tpu_custom_call.1} parent=55 // pred_region
          %423 = dma.done [#allocation12], 2048
        $region80: #{tpu_custom_call.1} parent=55 // pred_fallthru
          _
        // Predicated region
        $region81: #{tpu_custom_call.1} parent=55 // pred_check
          %p424 = pneg %p183
        $region82: #{tpu_custom_call.1} parent=55 // pred_check_branch
          %426 = sbr.rel (%p424) target = $region84
        $region83: #{tpu_custom_call.1} parent=55 // pred_region
          %427 = dma.done [#allocation12], 2048
        $region84: #{tpu_custom_call.1} parent=55 // pred_fallthru
          _
        %s428 = sand.u32 %s39, 1
        %s429 = scalar_lea.sflag [#allocation3], %s428
        %s430 = sand.u32 %s39, 1
        %s431 = smul.addr %s430, 16
        %s432 = scalar_lea.vmem [#allocation2], %s431
        %p433 = pneg %p52
        %p434 = pneg %p49
        %s435 = sand.u32 %s31, 1
        %s436 = scalar_lea.sflag [#allocation6], %s435
        %s437 = sand.u32 %s65, 1
        %s438 = smul.addr %s437, 16
        %s439 = scalar_lea.vmem [#allocation5], %s438
        %p440 = pneg %p78
        %p441 = pneg %p75
        %p442 = pneg %p99
        %p443 = pneg %p96
        %p444 = pneg %p120
        %p445 = pneg %p117
        %p446 = pneg %p141
        %p447 = pneg %p138
        %p448 = pneg %p162
        %p449 = pneg %p159
        %p450 = pneg %p183
        %p451 = pneg %p180
        %p452 = pneg %p204
        %p453 = pneg %p201
        %p454 = pneg %p225
        %p455 = pneg %p222
        %p456 = pneg %p251
        %p457 = pneg %p248
        %s458 = sand.u32 %s238, 1
        %s459 = scalar_lea.sflag [#allocation4], %s458
        %s460 = sand.u32 %s238, 1
        %s461 = smul.addr %s460, 16
        %s462 = scalar_lea.vmem [#allocation14], %s461
        %s463 = smul.u32 2, %s31
        %s464 = smul.u32 2, %s31
        %s465 = smul.u32 2, %s31
        %v467 = vld [vmem:[%s394] sm:$0xff]
        %v468 = vld [vmem:[%s394 + $0x8] sm:$0xff]
        %v469 = vld [vmem:[%s403] sm:$0xff]
        %v470 = vld [vmem:[%s403 + $0x8] sm:$0xff]
        %v471 = vpack.c.bf16 %v468, %v467
        %v472 = vpack.c.bf16 %v470, %v469
        %v473 = vld [vmem:[%s7] sm:$0x1]
        %v474 = vld [vmem:[%s7 + $0x1] sm:$0x1]
        %v475 = vld [vmem:[%s7 + $0x2] sm:$0x1]
        %v476 = vld [vmem:[%s7 + $0x3] sm:$0x1]
        %v477 = vld [vmem:[%s7 + $0x4] sm:$0x1]
        %v478 = vld [vmem:[%s7 + $0x5] sm:$0x1]
        %v479 = vld [vmem:[%s7 + $0x6] sm:$0x1]
        %v480 = vld [vmem:[%s8] ss:$2 sm:$0x3]
        %s481 = scalar_lea.vmem %s8, 1
        %v482 = vld [vmem:[%s481] ss:$2 sm:$0x3]
        %v483 = vld [vmem:[#allocation7] sm:$0xf]
        %v484 = vld [vmem:[#allocation7 + $0x4] sm:$0xf]
        %v485 = vld [vmem:[#allocation7 + $0x8] sm:$0xf]
        %v486 = vld [vmem:[#allocation7 + $0xc] sm:$0xf]
        %v487 = vld [vmem:[#allocation7 + $0x10] sm:$0xf]
        %v488 = vld [vmem:[#allocation7 + $0x14] sm:$0xf]
        %v489 = vld [vmem:[#allocation7 + $0x18] sm:$0xf]
        %v490 = vld [vmem:[#allocation7 + $0x1c] sm:$0xf]
        %v491 = vld [vmem:[#allocation7 + $0x20] sm:$0xf]
        %v492 = vld [vmem:[#allocation7 + $0x24] sm:$0xf]
        %v493 = vld [vmem:[#allocation7 + $0x28] sm:$0xf]
        %v494 = vld [vmem:[#allocation7 + $0x2c] sm:$0xf]
        %v495 = vld [vmem:[#allocation7 + $0x30] sm:$0xf]
        %v496 = vld [vmem:[#allocation7 + $0x34] sm:$0xf]
        %v497 = vld [vmem:[#allocation7 + $0x38] sm:$0xf]
        %v498 = vld [vmem:[#allocation7 + $0x3c] sm:$0xf]
        %v499 = vlaneseq
        %v500 = vshrl.u32 %v499, 7
        %v501 = vsub.s32 0, %v500
        %v502 = vrot.slane %v473, %v501
        %v519 = vunpack.c.l.b16 %v483
        %v520 = vunpack.c.l.b16 %v484
        %v521 = vunpack.c.l.b16 %v485
        %v522 = vunpack.c.l.b16 %v486
        %v523 = vunpack.c.l.b16 %v487
        %v524 = vunpack.c.l.b16 %v488
        %v525 = vunpack.c.l.b16 %v489
        %v526 = vunpack.c.l.b16 %v490
        %v527 = vunpack.c.l.b16 %v491
        %v528 = vunpack.c.l.b16 %v492
        %v529 = vunpack.c.l.b16 %v493
        %v530 = vunpack.c.l.b16 %v494
        %v531 = vunpack.c.l.b16 %v495
        %v532 = vunpack.c.l.b16 %v496
        %v533 = vunpack.c.l.b16 %v497
        %v534 = vunpack.c.l.b16 %v498
        %v535 = vpack.c.b16 %v520, %v519
        %v536 = vpack.c.b16 %v522, %v521
        %v537 = vpack.c.b16 %v524, %v523
        %v538 = vpack.c.b16 %v526, %v525
        %v539 = vpack.c.b16 %v528, %v527
        %v540 = vpack.c.b16 %v530, %v529
        %v541 = vpack.c.b16 %v532, %v531
        %v542 = vpack.c.b16 %v534, %v533
        %551 = vmatprep.subr.bf16.mxu0 0
        %552 = vmatpush1.bf16.msra.mxu0 %v542
        %553 = vmatprep.subr.bf16.mxu0 0
        %554 = vmatpush1.bf16.msra.mxu0 %v541
        %555 = vmatprep.subr.bf16.mxu0 0
        %556 = vmatpush1.bf16.msra.mxu0 %v540
        %557 = vmatprep.subr.bf16.mxu0 0
        %558 = vmatpush1.bf16.msra.mxu0 %v539
        %559 = vmatprep.subr.bf16.mxu0 0
        %560 = vmatpush1.bf16.msra.mxu0 %v538
        %561 = vmatprep.subr.bf16.mxu0 0
        %562 = vmatpush1.bf16.msra.mxu0 %v537
        %563 = vmatprep.subr.bf16.mxu0 0
        %564 = vmatpush1.bf16.msra.mxu0 %v536
        %565 = vmatprep.subr.bf16.mxu0 0
        %566 = vmatpush1.bf16.msra.mxu0 %v535
        %567 = vmatprep.subr.bf16.mxu0 0
        %568 = vmatpush2.bf16.msra.mxu0 0
        %569 = vmatprep.subr.bf16.mxu0 0
        %570 = vmatpush2.bf16.msra.mxu0 0
        %571 = vmatprep.subr.bf16.mxu0 0
        %572 = vmatpush2.bf16.msra.mxu0 0
        %573 = vmatprep.subr.bf16.mxu0 0
        %574 = vmatpush2.bf16.msra.mxu0 0
        %575 = vmatprep.subr.bf16.mxu0 0
        %576 = vmatpush2.bf16.msra.mxu0 0
        %577 = vmatprep.subr.bf16.mxu0 0
        %578 = vmatpush2.bf16.msra.mxu0 0
        %579 = vmatprep.subr.bf16.mxu0 0
        %580 = vmatpush2.bf16.msra.mxu0 0
        %581 = vmatprep.subr.bf16.mxu0 0
        %582 = vmatpush2.bf16.msra.mxu0 0
        %583 = vmatprep.mubr.bf16.mxu0 0
        %584 = vmatmul.mubr.bf16.gmra.mxu0 %v471
        %v585 = vpop.f32.mrf.mxu0
        %v586 = vadd.f32 %v502, %v585
        %v587 = vpop.f32.mrf.mxu0
        %v588 = vpop.f32.mrf.mxu0
        %v589 = vadd.f32 %v502, %v588
        %v590 = vpop.f32.mrf.mxu0
        %591 = vdwg.mxu0
        %v592 = vld [vmem:[#allocation8] sm:$0xff]
        %v593 = vld [vmem:[#allocation8 + $0x8] sm:$0xff]
        %v594 = vld [vmem:[#allocation8 + $0x10] sm:$0xff]
        %v595 = vld [vmem:[#allocation8 + $0x18] sm:$0xff]
        %v596 = vld [vmem:[#allocation8 + $0x20] sm:$0xff]
        %v597 = vld [vmem:[#allocation8 + $0x28] sm:$0xff]
        %v598 = vld [vmem:[#allocation8 + $0x30] sm:$0xff]
        %v599 = vld [vmem:[#allocation8 + $0x38] sm:$0xff]
        %v600 = vld [vmem:[#allocation8 + $0x40] sm:$0xff]
        %v601 = vld [vmem:[#allocation8 + $0x48] sm:$0xff]
        %v602 = vld [vmem:[#allocation8 + $0x50] sm:$0xff]
        %v603 = vld [vmem:[#allocation8 + $0x58] sm:$0xff]
        %v604 = vld [vmem:[#allocation8 + $0x60] sm:$0xff]
        %v605 = vld [vmem:[#allocation8 + $0x68] sm:$0xff]
        %v606 = vld [vmem:[#allocation8 + $0x70] sm:$0xff]
        %v607 = vld [vmem:[#allocation8 + $0x78] sm:$0xff]
        %v609 = vlaneseq
        %v610 = vshrl.u32 %v609, 7
        %v611 = vsub.s32 0, %v610
        %v612 = vrot.slane %v480, %v611
        %v613 = vlaneseq
        %v614 = vshrl.u32 %v613, 7
        %v615 = vsub.s32 1, %v614
        %v616 = vrot.slane %v480, %v615
        %v635 = vunpack.c.l.b16 %v592
        %v636 = vunpack.c.h.b16 %v592
        %v637 = vunpack.c.l.b16 %v593
        %v638 = vunpack.c.h.b16 %v593
        %v639 = vunpack.c.l.b16 %v594
        %v640 = vunpack.c.h.b16 %v594
        %v641 = vunpack.c.l.b16 %v595
        %v642 = vunpack.c.h.b16 %v595
        %v643 = vunpack.c.l.b16 %v596
        %v644 = vunpack.c.h.b16 %v596
        %v645 = vunpack.c.l.b16 %v597
        %v646 = vunpack.c.h.b16 %v597
        %v647 = vunpack.c.l.b16 %v598
        %v648 = vunpack.c.h.b16 %v598
        %v649 = vunpack.c.l.b16 %v599
        %v650 = vunpack.c.h.b16 %v599
        %v651 = vunpack.c.l.b16 %v600
        %v652 = vunpack.c.h.b16 %v600
        %v653 = vunpack.c.l.b16 %v601
        %v654 = vunpack.c.h.b16 %v601
        %v655 = vunpack.c.l.b16 %v602
        %v656 = vunpack.c.h.b16 %v602
        %v657 = vunpack.c.l.b16 %v603
        %v658 = vunpack.c.h.b16 %v603
        %v659 = vunpack.c.l.b16 %v604
        %v660 = vunpack.c.h.b16 %v604
        %v661 = vunpack.c.l.b16 %v605
        %v662 = vunpack.c.h.b16 %v605
        %v663 = vunpack.c.l.b16 %v606
        %v664 = vunpack.c.h.b16 %v606
        %v665 = vunpack.c.l.b16 %v607
        %v666 = vunpack.c.h.b16 %v607
        %v667 = vpack.c.b16 %v637, %v635
        %v668 = vpack.c.b16 %v638, %v636
        %v669 = vpack.c.b16 %v641, %v639
        %v670 = vpack.c.b16 %v642, %v640
        %v671 = vpack.c.b16 %v645, %v643
        %v672 = vpack.c.b16 %v646, %v644
        %v673 = vpack.c.b16 %v649, %v647
        %v674 = vpack.c.b16 %v650, %v648
        %v675 = vpack.c.b16 %v653, %v651
        %v676 = vpack.c.b16 %v654, %v652
        %v677 = vpack.c.b16 %v657, %v655
        %v678 = vpack.c.b16 %v658, %v656
        %v679 = vpack.c.b16 %v661, %v659
        %v680 = vpack.c.b16 %v662, %v660
        %v681 = vpack.c.b16 %v665, %v663
        %v682 = vpack.c.b16 %v666, %v664
        %699 = vmatprep.subr.bf16.mxu0 %v682
        %700 = vmatpush1.bf16.msra.mxu0 %v681
        %701 = vmatprep.subr.bf16.mxu0 %v680
        %702 = vmatpush1.bf16.msra.mxu0 %v679
        %703 = vmatprep.subr.bf16.mxu0 %v678
        %704 = vmatpush1.bf16.msra.mxu0 %v677
        %705 = vmatprep.subr.bf16.mxu0 %v676
        %706 = vmatpush1.bf16.msra.mxu0 %v675
        %707 = vmatprep.subr.bf16.mxu0 %v674
        %708 = vmatpush1.bf16.msra.mxu0 %v673
        %709 = vmatprep.subr.bf16.mxu0 %v672
        %710 = vmatpush1.bf16.msra.mxu0 %v671
        %711 = vmatprep.subr.bf16.mxu0 %v670
        %712 = vmatpush1.bf16.msra.mxu0 %v669
        %713 = vmatprep.subr.bf16.mxu0 %v668
        %714 = vmatpush1.bf16.msra.mxu0 %v667
        %715 = vmatprep.subr.bf16.mxu0 0
        %716 = vmatpush2.bf16.msra.mxu0 0
        %717 = vmatprep.subr.bf16.mxu0 0
        %718 = vmatpush2.bf16.msra.mxu0 0
        %719 = vmatprep.subr.bf16.mxu0 0
        %720 = vmatpush2.bf16.msra.mxu0 0
        %721 = vmatprep.subr.bf16.mxu0 0
        %722 = vmatpush2.bf16.msra.mxu0 0
        %723 = vmatprep.subr.bf16.mxu0 0
        %724 = vmatpush2.bf16.msra.mxu0 0
        %725 = vmatprep.subr.bf16.mxu0 0
        %726 = vmatpush2.bf16.msra.mxu0 0
        %727 = vmatprep.subr.bf16.mxu0 0
        %728 = vmatpush2.bf16.msra.mxu0 0
        %729 = vmatprep.subr.bf16.mxu0 0
        %730 = vmatpush2.bf16.msra.mxu0 0
        %731 = vmatprep.mubr.bf16.mxu0 0
        %732 = vmatmul.mubr.bf16.gmra.mxu0 %v472
        %v733 = vpop.f32.mrf.mxu0
        %v734 = vadd.f32 %v612, %v733
        %v735 = vpop.f32.mrf.mxu0
        %v736 = vadd.f32 %v616, %v735
        %v737 = vpop.f32.mrf.mxu0
        %v738 = vadd.f32 %v612, %v737
        %v739 = vpop.f32.mrf.mxu0
        %v740 = vadd.f32 %v616, %v739
        %741 = vdwg.mxu0
        %v742 = vmul.f32 %v586, 0.088388346
        %v743 = vmul.f32 %v589, 0.088388346
        %v744 = vpack.c.bf16 %v743, %v742
        %v746 = vunpack.c.l.b16 %v744
        %v747 = vunpack.c.h.b16 %v744
        %v748 = vpack.c.b16 %v746, %v746
        %v749 = vpack.c.b16 %v747, %v747
        %v752 = vpack.c.bf16 %v738, %v734
        %v754 = vunpack.c.l.b16 %v752
        %v755 = vunpack.c.h.b16 %v752
        %v756 = vpack.c.b16 %v754, %v754
        %v757 = vpack.c.b16 %v755, %v755
        %v760 = vpack.c.bf16 %v740, %v736
        %v762 = vunpack.c.l.b16 %v760
        %v763 = vunpack.c.h.b16 %v760
        %v764 = vpack.c.b16 %v762, %v762
        %v765 = vpack.c.b16 %v763, %v763
        %766 = vmatprep.subr.bf16.mxu0 0
        %767 = vmatpush1.bf16.xpose.msra.mxu0 0
        %768 = vmatprep.subr.bf16.mxu0 0
        %769 = vmatpush1.bf16.xpose.msra.mxu0 0
        %770 = vmatprep.subr.bf16.mxu0 0
        %771 = vmatpush1.bf16.xpose.msra.mxu0 0
        %772 = vmatprep.subr.bf16.mxu0 0
        %773 = vmatpush1.bf16.xpose.msra.mxu0 0
        %774 = vmatprep.subr.bf16.mxu0 0
        %775 = vmatpush1.bf16.xpose.msra.mxu0 0
        %776 = vmatprep.subr.bf16.mxu0 0
        %777 = vmatpush1.bf16.xpose.msra.mxu0 0
        %778 = vmatprep.subr.bf16.mxu0 0
        %779 = vmatpush1.bf16.xpose.msra.mxu0 0
        %780 = vmatprep.subr.bf16.mxu0 0
        %781 = vmatpush1.bf16.xpose.msra.mxu0 %v756
        %782 = vmatprep.subr.bf16.mxu0 0
        %783 = vmatpush2.bf16.xpose.msra.mxu0 0
        %784 = vmatprep.subr.bf16.mxu0 0
        %785 = vmatpush2.bf16.xpose.msra.mxu0 0
        %786 = vmatprep.subr.bf16.mxu0 0
        %787 = vmatpush2.bf16.xpose.msra.mxu0 0
        %788 = vmatprep.subr.bf16.mxu0 0
        %789 = vmatpush2.bf16.xpose.msra.mxu0 0
        %790 = vmatprep.subr.bf16.mxu0 0
        %791 = vmatpush2.bf16.xpose.msra.mxu0 0
        %792 = vmatprep.subr.bf16.mxu0 0
        %793 = vmatpush2.bf16.xpose.msra.mxu0 0
        %794 = vmatprep.subr.bf16.mxu0 0
        %795 = vmatpush2.bf16.xpose.msra.mxu0 0
        %796 = vmatprep.subr.bf16.mxu0 0
        %797 = vmatpush2.bf16.xpose.msra.mxu0 0
        %798 = vmatprep.mubr.bf16.mxu0 0
        %799 = vmatmul.mubr.bf16.gmra.mxu0 %v748
        %v800 = vpop.f32.mrf.mxu0
        %v801 = vadd.f32 0.0, %v800
        %v802 = vpop.f32.mrf.mxu0
        %v803 = vpop.f32.mrf.mxu0
        %v804 = vpop.f32.mrf.mxu0
        %805 = vdwg.mxu0
        %806 = vmatprep.subr.bf16.mxu0 0
        %807 = vmatpush1.bf16.xpose.msra.mxu0 0
        %808 = vmatprep.subr.bf16.mxu0 0
        %809 = vmatpush1.bf16.xpose.msra.mxu0 0
        %810 = vmatprep.subr.bf16.mxu0 0
        %811 = vmatpush1.bf16.xpose.msra.mxu0 0
        %812 = vmatprep.subr.bf16.mxu0 0
        %813 = vmatpush1.bf16.xpose.msra.mxu0 0
        %814 = vmatprep.subr.bf16.mxu0 0
        %815 = vmatpush1.bf16.xpose.msra.mxu0 0
        %816 = vmatprep.subr.bf16.mxu0 0
        %817 = vmatpush1.bf16.xpose.msra.mxu0 0
        %818 = vmatprep.subr.bf16.mxu0 0
        %819 = vmatpush1.bf16.xpose.msra.mxu0 0
        %820 = vmatprep.subr.bf16.mxu0 0
        %821 = vmatpush1.bf16.xpose.msra.mxu0 %v757
        %822 = vmatprep.subr.bf16.mxu0 0
        %823 = vmatpush2.bf16.xpose.msra.mxu0 0
        %824 = vmatprep.subr.bf16.mxu0 0
        %825 = vmatpush2.bf16.xpose.msra.mxu0 0
        %826 = vmatprep.subr.bf16.mxu0 0
        %827 = vmatpush2.bf16.xpose.msra.mxu0 0
        %828 = vmatprep.subr.bf16.mxu0 0
        %829 = vmatpush2.bf16.xpose.msra.mxu0 0
        %830 = vmatprep.subr.bf16.mxu0 0
        %831 = vmatpush2.bf16.xpose.msra.mxu0 0
        %832 = vmatprep.subr.bf16.mxu0 0
        %833 = vmatpush2.bf16.xpose.msra.mxu0 0
        %834 = vmatprep.subr.bf16.mxu0 0
        %835 = vmatpush2.bf16.xpose.msra.mxu0 0
        %836 = vmatprep.subr.bf16.mxu0 0
        %837 = vmatpush2.bf16.xpose.msra.mxu0 0
        %838 = vmatprep.mubr.bf16.mxu0 0
        %839 = vmatmul.mubr.bf16.gmra.mxu0 %v749
        %v840 = vpop.f32.mrf.mxu0
        %v841 = vadd.f32 0.0, %v840
        %v842 = vpop.f32.mrf.mxu0
        %v843 = vpop.f32.mrf.mxu0
        %v844 = vpop.f32.mrf.mxu0
        %845 = vdwg.mxu0
        %vm846 = vcmask 64512
        %v847 = vsel %vm846, %v801, -inf
        %848 = vmax.xlane.f32.xlu0 %v847
        %v849 = vpop.xlane.xlu0 %848
        %v850 = vsel %vm846, %v841, -inf
        %851 = vmax.xlane.f32.xlu0 %v850
        %v852 = vpop.xlane.xlu0 %851
        %v853 = vsub.f32 %v801, %v849
        %v854 = vsub.f32 %v841, %v852
        %v855 = vmul.f32 %v853, 1.442695
        %v856 = vpow.pop %v855
        %v857 = vmul.f32 %v854, 1.442695
        %v858 = vpow.pop %v857
        %v859 = vsel %vm846, %v856, 0.0
        %860 = vadd.xlane.f32.xlu0 %v859
        %v861 = vpop.xlane.xlu0 %860
        %v862 = vsel %vm846, %v858, 0.0
        %863 = vadd.xlane.f32.xlu0 %v862
        %v864 = vpop.xlane.xlu0 %863
        %v865 = vrcp.pop %v861
        %v866 = vrcp.pop %v864
        %v867 = vmul.f32 %v856, %v865
        %v868 = vmul.f32 %v858, %v866
        %v869 = vpack.c.bf16 %v867, %v867
        %v870 = vpack.c.bf16 %v868, %v868
        %v872 = vsel %vm846, %v869, 0
        %vm874 = vcmask 1043456
        %v876 = vsel %vm874, %v764, 0
        %878 = vmatprep.subr.bf16.mxu0 0
        %879 = vmatpush1.bf16.msra.mxu0 0
        %880 = vmatprep.subr.bf16.mxu0 0
        %881 = vmatpush1.bf16.msra.mxu0 0
        %882 = vmatprep.subr.bf16.mxu0 0
        %883 = vmatpush1.bf16.msra.mxu0 0
        %884 = vmatprep.subr.bf16.mxu0 0
        %885 = vmatpush1.bf16.msra.mxu0 0
        %886 = vmatprep.subr.bf16.mxu0 0
        %887 = vmatpush1.bf16.msra.mxu0 0
        %888 = vmatprep.subr.bf16.mxu0 0
        %889 = vmatpush1.bf16.msra.mxu0 0
        %890 = vmatprep.subr.bf16.mxu0 0
        %891 = vmatpush1.bf16.msra.mxu0 0
        %892 = vmatprep.subr.bf16.mxu0 0
        %893 = vmatpush1.bf16.msra.mxu0 %v876
        %894 = vmatprep.subr.bf16.mxu0 0
        %895 = vmatpush2.bf16.msra.mxu0 0
        %896 = vmatprep.subr.bf16.mxu0 0
        %897 = vmatpush2.bf16.msra.mxu0 0
        %898 = vmatprep.subr.bf16.mxu0 0
        %899 = vmatpush2.bf16.msra.mxu0 0
        %900 = vmatprep.subr.bf16.mxu0 0
        %901 = vmatpush2.bf16.msra.mxu0 0
        %902 = vmatprep.subr.bf16.mxu0 0
        %903 = vmatpush2.bf16.msra.mxu0 0
        %904 = vmatprep.subr.bf16.mxu0 0
        %905 = vmatpush2.bf16.msra.mxu0 0
        %906 = vmatprep.subr.bf16.mxu0 0
        %907 = vmatpush2.bf16.msra.mxu0 0
        %908 = vmatprep.subr.bf16.mxu0 0
        %909 = vmatpush2.bf16.msra.mxu0 0
        %910 = vmatprep.mubr.bf16.mxu0 0
        %911 = vmatmul.mubr.bf16.gmra.mxu0 %v872
        %v912 = vpop.f32.mrf.mxu0
        %v913 = vadd.f32 0.0, %v912
        %v914 = vpop.f32.mrf.mxu0
        %v915 = vpop.f32.mrf.mxu0
        %v916 = vpop.f32.mrf.mxu0
        %917 = vdwg.mxu0
        %v919 = vsel %vm846, %v870, 0
        %v922 = vsel %vm874, %v765, 0
        %924 = vmatprep.subr.bf16.mxu0 0
        %925 = vmatpush1.bf16.msra.mxu0 0
        %926 = vmatprep.subr.bf16.mxu0 0
        %927 = vmatpush1.bf16.msra.mxu0 0
        %928 = vmatprep.subr.bf16.mxu0 0
        %929 = vmatpush1.bf16.msra.mxu0 0
        %930 = vmatprep.subr.bf16.mxu0 0
        %931 = vmatpush1.bf16.msra.mxu0 0
        %932 = vmatprep.subr.bf16.mxu0 0
        %933 = vmatpush1.bf16.msra.mxu0 0
        %934 = vmatprep.subr.bf16.mxu0 0
        %935 = vmatpush1.bf16.msra.mxu0 0
        %936 = vmatprep.subr.bf16.mxu0 0
        %937 = vmatpush1.bf16.msra.mxu0 0
        %938 = vmatprep.subr.bf16.mxu0 0
        %939 = vmatpush1.bf16.msra.mxu0 %v922
        %940 = vmatprep.subr.bf16.mxu0 0
        %941 = vmatpush2.bf16.msra.mxu0 0
        %942 = vmatprep.subr.bf16.mxu0 0
        %943 = vmatpush2.bf16.msra.mxu0 0
        %944 = vmatprep.subr.bf16.mxu0 0
        %945 = vmatpush2.bf16.msra.mxu0 0
        %946 = vmatprep.subr.bf16.mxu0 0
        %947 = vmatpush2.bf16.msra.mxu0 0
        %948 = vmatprep.subr.bf16.mxu0 0
        %949 = vmatpush2.bf16.msra.mxu0 0
        %950 = vmatprep.subr.bf16.mxu0 0
        %951 = vmatpush2.bf16.msra.mxu0 0
        %952 = vmatprep.subr.bf16.mxu0 0
        %953 = vmatpush2.bf16.msra.mxu0 0
        %954 = vmatprep.subr.bf16.mxu0 0
        %955 = vmatpush2.bf16.msra.mxu0 0
        %956 = vmatprep.mubr.bf16.mxu0 0
        %957 = vmatmul.mubr.bf16.gmra.mxu0 %v919
        %v958 = vpop.f32.mrf.mxu0
        %v959 = vadd.f32 0.0, %v958
        %v960 = vpop.f32.mrf.mxu0
        %v961 = vpop.f32.mrf.mxu0
        %v962 = vpop.f32.mrf.mxu0
        %963 = vdwg.mxu0
        %v964 = vpack.c.bf16 %v959, %v913
        %v965 = vld [vmem:[#allocation10] sm:$0xf]
        %v966 = vld [vmem:[#allocation10 + $0x4] sm:$0xf]
        %v967 = vld [vmem:[#allocation10 + $0x8] sm:$0xf]
        %v968 = vld [vmem:[#allocation10 + $0xc] sm:$0xf]
        %v969 = vld [vmem:[#allocation10 + $0x10] sm:$0xf]
        %v970 = vld [vmem:[#allocation10 + $0x14] sm:$0xf]
        %v971 = vld [vmem:[#allocation10 + $0x18] sm:$0xf]
        %v972 = vld [vmem:[#allocation10 + $0x1c] sm:$0xf]
        %v973 = vld [vmem:[#allocation10 + $0x20] sm:$0xf]
        %v974 = vld [vmem:[#allocation10 + $0x24] sm:$0xf]
        %v975 = vld [vmem:[#allocation10 + $0x28] sm:$0xf]
        %v976 = vld [vmem:[#allocation10 + $0x2c] sm:$0xf]
        %v977 = vld [vmem:[#allocation10 + $0x30] sm:$0xf]
        %v978 = vld [vmem:[#allocation10 + $0x34] sm:$0xf]
        %v979 = vld [vmem:[#allocation10 + $0x38] sm:$0xf]
        %v980 = vld [vmem:[#allocation10 + $0x3c] sm:$0xf]
        %v981 = vlaneseq
        %v982 = vshrl.u32 %v981, 7
        %v983 = vsub.s32 0, %v982
        %v984 = vrot.slane %v474, %v983
        %v1001 = vunpack.c.l.b16 %v965
        %v1002 = vunpack.c.l.b16 %v966
        %v1003 = vunpack.c.l.b16 %v967
        %v1004 = vunpack.c.l.b16 %v968
        %v1005 = vunpack.c.l.b16 %v969
        %v1006 = vunpack.c.l.b16 %v970
        %v1007 = vunpack.c.l.b16 %v971
        %v1008 = vunpack.c.l.b16 %v972
        %v1009 = vunpack.c.l.b16 %v973
        %v1010 = vunpack.c.l.b16 %v974
        %v1011 = vunpack.c.l.b16 %v975
        %v1012 = vunpack.c.l.b16 %v976
        %v1013 = vunpack.c.l.b16 %v977
        %v1014 = vunpack.c.l.b16 %v978
        %v1015 = vunpack.c.l.b16 %v979
        %v1016 = vunpack.c.l.b16 %v980
        %v1017 = vpack.c.b16 %v1002, %v1001
        %v1018 = vpack.c.b16 %v1004, %v1003
        %v1019 = vpack.c.b16 %v1006, %v1005
        %v1020 = vpack.c.b16 %v1008, %v1007
        %v1021 = vpack.c.b16 %v1010, %v1009
        %v1022 = vpack.c.b16 %v1012, %v1011
        %v1023 = vpack.c.b16 %v1014, %v1013
        %v1024 = vpack.c.b16 %v1016, %v1015
        %1033 = vmatprep.subr.bf16.mxu0 0
        %1034 = vmatpush1.bf16.msra.mxu0 %v1024
        %1035 = vmatprep.subr.bf16.mxu0 0
        %1036 = vmatpush1.bf16.msra.mxu0 %v1023
        %1037 = vmatprep.subr.bf16.mxu0 0
        %1038 = vmatpush1.bf16.msra.mxu0 %v1022
        %1039 = vmatprep.subr.bf16.mxu0 0
        %1040 = vmatpush1.bf16.msra.mxu0 %v1021
        %1041 = vmatprep.subr.bf16.mxu0 0
        %1042 = vmatpush1.bf16.msra.mxu0 %v1020
        %1043 = vmatprep.subr.bf16.mxu0 0
        %1044 = vmatpush1.bf16.msra.mxu0 %v1019
        %1045 = vmatprep.subr.bf16.mxu0 0
        %1046 = vmatpush1.bf16.msra.mxu0 %v1018
        %1047 = vmatprep.subr.bf16.mxu0 0
        %1048 = vmatpush1.bf16.msra.mxu0 %v1017
        %1049 = vmatprep.subr.bf16.mxu0 0
        %1050 = vmatpush2.bf16.msra.mxu0 0
        %1051 = vmatprep.subr.bf16.mxu0 0
        %1052 = vmatpush2.bf16.msra.mxu0 0
        %1053 = vmatprep.subr.bf16.mxu0 0
        %1054 = vmatpush2.bf16.msra.mxu0 0
        %1055 = vmatprep.subr.bf16.mxu0 0
        %1056 = vmatpush2.bf16.msra.mxu0 0
        %1057 = vmatprep.subr.bf16.mxu0 0
        %1058 = vmatpush2.bf16.msra.mxu0 0
        %1059 = vmatprep.subr.bf16.mxu0 0
        %1060 = vmatpush2.bf16.msra.mxu0 0
        %1061 = vmatprep.subr.bf16.mxu0 0
        %1062 = vmatpush2.bf16.msra.mxu0 0
        %1063 = vmatprep.subr.bf16.mxu0 0
        %1064 = vmatpush2.bf16.msra.mxu0 0
        %1065 = vmatprep.mubr.bf16.mxu0 0
        %1066 = vmatmul.mubr.bf16.gmra.mxu0 %v964
        %v1067 = vpop.f32.mrf.mxu0
        %v1068 = vadd.f32 %v984, %v1067
        %v1069 = vpop.f32.mrf.mxu0
        %v1070 = vpop.f32.mrf.mxu0
        %v1071 = vadd.f32 %v984, %v1070
        %v1072 = vpop.f32.mrf.mxu0
        %1073 = vdwg.mxu0
        %v1074 = vadd.f32 %v467, %v1068
        %v1075 = vadd.f32 %v468, %v1071
        %1076 = vadd.xlane.f32.xlu0 %v1074
        %v1077 = vpop.xlane.xlu0 %1076
        %1078 = vadd.xlane.f32.xlu0 %v1075
        %v1079 = vpop.xlane.xlu0 %1078
        %v1080 = vrcp.pop 128.0
        %v1081 = vmul.f32 %v1077, %v1080
        %v1082 = vmul.f32 %v1079, %v1080
        %v1083 = vsub.f32 %v1074, %v1081
        %v1084 = vsub.f32 %v1075, %v1082
        %v1085 = vmul.f32 %v1083, %v1083
        %v1086 = vmul.f32 %v1084, %v1084
        %1087 = vadd.xlane.f32.xlu0 %v1085
        %v1088 = vpop.xlane.xlu0 %1087
        %1089 = vadd.xlane.f32.xlu0 %v1086
        %v1090 = vpop.xlane.xlu0 %1089
        %v1091 = vmul.f32 %v1088, %v1080
        %v1092 = vmul.f32 %v1090, %v1080
        %v1093 = vadd.f32 %v1091, 1e-05
        %v1094 = vadd.f32 %v1092, 1e-05
        %v1095 = vrsqrt.pop %v1093
        %v1096 = vrsqrt.pop %v1094
        %v1097 = vmul.f32 %v1083, %v1095
        %v1098 = vmul.f32 %v1084, %v1096
        %v1099 = vlaneseq
        %v1100 = vshrl.u32 %v1099, 7
        %v1101 = vsub.s32 0, %v1100
        %v1102 = vrot.slane %v475, %v1101
        %v1103 = vmul.f32 %v1097, %v1102
        %v1104 = vmul.f32 %v1098, %v1102
        %v1105 = vlaneseq
        %v1106 = vshrl.u32 %v1105, 7
        %v1107 = vsub.s32 0, %v1106
        %v1108 = vrot.slane %v476, %v1107
        %v1109 = vadd.f32 %v1103, %v1108
        %v1110 = vadd.f32 %v1104, %v1108
        %v1111 = vpack.c.bf16 %v1110, %v1109
        %v1112 = vld [vmem:[#allocation11] sm:$0xff]
        %v1113 = vld [vmem:[#allocation11 + $0x8] sm:$0xff]
        %v1114 = vld [vmem:[#allocation11 + $0x10] sm:$0xff]
        %v1115 = vld [vmem:[#allocation11 + $0x18] sm:$0xff]
        %v1116 = vld [vmem:[#allocation11 + $0x20] sm:$0xff]
        %v1117 = vld [vmem:[#allocation11 + $0x28] sm:$0xff]
        %v1118 = vld [vmem:[#allocation11 + $0x30] sm:$0xff]
        %v1119 = vld [vmem:[#allocation11 + $0x38] sm:$0xff]
        %v1120 = vld [vmem:[#allocation11 + $0x40] sm:$0xff]
        %v1121 = vld [vmem:[#allocation11 + $0x48] sm:$0xff]
        %v1122 = vld [vmem:[#allocation11 + $0x50] sm:$0xff]
        %v1123 = vld [vmem:[#allocation11 + $0x58] sm:$0xff]
        %v1124 = vld [vmem:[#allocation11 + $0x60] sm:$0xff]
        %v1125 = vld [vmem:[#allocation11 + $0x68] sm:$0xff]
        %v1126 = vld [vmem:[#allocation11 + $0x70] sm:$0xff]
        %v1127 = vld [vmem:[#allocation11 + $0x78] sm:$0xff]
        %v1129 = vlaneseq
        %v1130 = vshrl.u32 %v1129, 7
        %v1131 = vsub.s32 0, %v1130
        %v1132 = vrot.slane %v482, %v1131
        %v1133 = vlaneseq
        %v1134 = vshrl.u32 %v1133, 7
        %v1135 = vsub.s32 1, %v1134
        %v1136 = vrot.slane %v482, %v1135
        %v1155 = vunpack.c.l.b16 %v1112
        %v1156 = vunpack.c.h.b16 %v1112
        %v1157 = vunpack.c.l.b16 %v1113
        %v1158 = vunpack.c.h.b16 %v1113
        %v1159 = vunpack.c.l.b16 %v1114
        %v1160 = vunpack.c.h.b16 %v1114
        %v1161 = vunpack.c.l.b16 %v1115
        %v1162 = vunpack.c.h.b16 %v1115
        %v1163 = vunpack.c.l.b16 %v1116
        %v1164 = vunpack.c.h.b16 %v1116
        %v1165 = vunpack.c.l.b16 %v1117
        %v1166 = vunpack.c.h.b16 %v1117
        %v1167 = vunpack.c.l.b16 %v1118
        %v1168 = vunpack.c.h.b16 %v1118
        %v1169 = vunpack.c.l.b16 %v1119
        %v1170 = vunpack.c.h.b16 %v1119
        %v1171 = vunpack.c.l.b16 %v1120
        %v1172 = vunpack.c.h.b16 %v1120
        %v1173 = vunpack.c.l.b16 %v1121
        %v1174 = vunpack.c.h.b16 %v1121
        %v1175 = vunpack.c.l.b16 %v1122
        %v1176 = vunpack.c.h.b16 %v1122
        %v1177 = vunpack.c.l.b16 %v1123
        %v1178 = vunpack.c.h.b16 %v1123
        %v1179 = vunpack.c.l.b16 %v1124
        %v1180 = vunpack.c.h.b16 %v1124
        %v1181 = vunpack.c.l.b16 %v1125
        %v1182 = vunpack.c.h.b16 %v1125
        %v1183 = vunpack.c.l.b16 %v1126
        %v1184 = vunpack.c.h.b16 %v1126
        %v1185 = vunpack.c.l.b16 %v1127
        %v1186 = vunpack.c.h.b16 %v1127
        %v1187 = vpack.c.b16 %v1157, %v1155
        %v1188 = vpack.c.b16 %v1158, %v1156
        %v1189 = vpack.c.b16 %v1161, %v1159
        %v1190 = vpack.c.b16 %v1162, %v1160
        %v1191 = vpack.c.b16 %v1165, %v1163
        %v1192 = vpack.c.b16 %v1166, %v1164
        %v1193 = vpack.c.b16 %v1169, %v1167
        %v1194 = vpack.c.b16 %v1170, %v1168
        %v1195 = vpack.c.b16 %v1173, %v1171
        %v1196 = vpack.c.b16 %v1174, %v1172
        %v1197 = vpack.c.b16 %v1177, %v1175
        %v1198 = vpack.c.b16 %v1178, %v1176
        %v1199 = vpack.c.b16 %v1181, %v1179
        %v1200 = vpack.c.b16 %v1182, %v1180
        %v1201 = vpack.c.b16 %v1185, %v1183
        %v1202 = vpack.c.b16 %v1186, %v1184
        %1219 = vmatprep.subr.bf16.mxu0 %v1202
        %1220 = vmatpush1.bf16.msra.mxu0 %v1201
        %1221 = vmatprep.subr.bf16.mxu0 %v1200
        %1222 = vmatpush1.bf16.msra.mxu0 %v1199
        %1223 = vmatprep.subr.bf16.mxu0 %v1198
        %1224 = vmatpush1.bf16.msra.mxu0 %v1197
        %1225 = vmatprep.subr.bf16.mxu0 %v1196
        %1226 = vmatpush1.bf16.msra.mxu0 %v1195
        %1227 = vmatprep.subr.bf16.mxu0 %v1194
        %1228 = vmatpush1.bf16.msra.mxu0 %v1193
        %1229 = vmatprep.subr.bf16.mxu0 %v1192
        %1230 = vmatpush1.bf16.msra.mxu0 %v1191
        %1231 = vmatprep.subr.bf16.mxu0 %v1190
        %1232 = vmatpush1.bf16.msra.mxu0 %v1189
        %1233 = vmatprep.subr.bf16.mxu0 %v1188
        %1234 = vmatpush1.bf16.msra.mxu0 %v1187
        %1235 = vmatprep.subr.bf16.mxu0 0
        %1236 = vmatpush2.bf16.msra.mxu0 0
        %1237 = vmatprep.subr.bf16.mxu0 0
        %1238 = vmatpush2.bf16.msra.mxu0 0
        %1239 = vmatprep.subr.bf16.mxu0 0
        %1240 = vmatpush2.bf16.msra.mxu0 0
        %1241 = vmatprep.subr.bf16.mxu0 0
        %1242 = vmatpush2.bf16.msra.mxu0 0
        %1243 = vmatprep.subr.bf16.mxu0 0
        %1244 = vmatpush2.bf16.msra.mxu0 0
        %1245 = vmatprep.subr.bf16.mxu0 0
        %1246 = vmatpush2.bf16.msra.mxu0 0
        %1247 = vmatprep.subr.bf16.mxu0 0
        %1248 = vmatpush2.bf16.msra.mxu0 0
        %1249 = vmatprep.subr.bf16.mxu0 0
        %1250 = vmatpush2.bf16.msra.mxu0 0
        %1251 = vmatprep.mubr.bf16.mxu0 0
        %1252 = vmatmul.mubr.bf16.gmra.mxu0 %v1111
        %v1253 = vpop.f32.mrf.mxu0
        %v1254 = vadd.f32 %v1132, %v1253
        %v1255 = vpop.f32.mrf.mxu0
        %v1256 = vadd.f32 %v1136, %v1255
        %v1257 = vpop.f32.mrf.mxu0
        %v1258 = vadd.f32 %v1132, %v1257
        %v1259 = vpop.f32.mrf.mxu0
        %v1260 = vadd.f32 %v1136, %v1259
        %1261 = vdwg.mxu0
        %v1262 = vmax.f32 %v1254, 0.0
        %v1263 = vmax.f32 %v1256, 0.0
        %v1264 = vmax.f32 %v1258, 0.0
        %v1265 = vmax.f32 %v1260, 0.0
        %v1266 = vpack.c.bf16 %v1264, %v1262
        %v1267 = vpack.c.bf16 %v1265, %v1263
        %v1268 = vld [vmem:[#allocation13] sm:$0xf]
        %v1269 = vld [vmem:[#allocation13 + $0x4] sm:$0xf]
        %v1270 = vld [vmem:[#allocation13 + $0x8] sm:$0xf]
        %v1271 = vld [vmem:[#allocation13 + $0xc] sm:$0xf]
        %v1272 = vld [vmem:[#allocation13 + $0x10] sm:$0xf]
        %v1273 = vld [vmem:[#allocation13 + $0x14] sm:$0xf]
        %v1274 = vld [vmem:[#allocation13 + $0x18] sm:$0xf]
        %v1275 = vld [vmem:[#allocation13 + $0x1c] sm:$0xf]
        %v1276 = vld [vmem:[#allocation13 + $0x20] sm:$0xf]
        %v1277 = vld [vmem:[#allocation13 + $0x24] sm:$0xf]
        %v1278 = vld [vmem:[#allocation13 + $0x28] sm:$0xf]
        %v1279 = vld [vmem:[#allocation13 + $0x2c] sm:$0xf]
        %v1280 = vld [vmem:[#allocation13 + $0x30] sm:$0xf]
        %v1281 = vld [vmem:[#allocation13 + $0x34] sm:$0xf]
        %v1282 = vld [vmem:[#allocation13 + $0x38] sm:$0xf]
        %v1283 = vld [vmem:[#allocation13 + $0x3c] sm:$0xf]
        %v1284 = vld [vmem:[#allocation13 + $0x40] sm:$0xf]
        %v1285 = vld [vmem:[#allocation13 + $0x44] sm:$0xf]
        %v1286 = vld [vmem:[#allocation13 + $0x48] sm:$0xf]
        %v1287 = vld [vmem:[#allocation13 + $0x4c] sm:$0xf]
        %v1288 = vld [vmem:[#allocation13 + $0x50] sm:$0xf]
        %v1289 = vld [vmem:[#allocation13 + $0x54] sm:$0xf]
        %v1290 = vld [vmem:[#allocation13 + $0x58] sm:$0xf]
        %v1291 = vld [vmem:[#allocation13 + $0x5c] sm:$0xf]
        %v1292 = vld [vmem:[#allocation13 + $0x60] sm:$0xf]
        %v1293 = vld [vmem:[#allocation13 + $0x64] sm:$0xf]
        %v1294 = vld [vmem:[#allocation13 + $0x68] sm:$0xf]
        %v1295 = vld [vmem:[#allocation13 + $0x6c] sm:$0xf]
        %v1296 = vld [vmem:[#allocation13 + $0x70] sm:$0xf]
        %v1297 = vld [vmem:[#allocation13 + $0x74] sm:$0xf]
        %v1298 = vld [vmem:[#allocation13 + $0x78] sm:$0xf]
        %v1299 = vld [vmem:[#allocation13 + $0x7c] sm:$0xf]
        %v1300 = vlaneseq
        %v1301 = vshrl.u32 %v1300, 7
        %v1302 = vsub.s32 0, %v1301
        %v1303 = vrot.slane %v477, %v1302
        %v1336 = vunpack.c.l.b16 %v1268
        %v1337 = vunpack.c.l.b16 %v1269
        %v1338 = vunpack.c.l.b16 %v1270
        %v1339 = vunpack.c.l.b16 %v1271
        %v1340 = vunpack.c.l.b16 %v1272
        %v1341 = vunpack.c.l.b16 %v1273
        %v1342 = vunpack.c.l.b16 %v1274
        %v1343 = vunpack.c.l.b16 %v1275
        %v1344 = vunpack.c.l.b16 %v1276
        %v1345 = vunpack.c.l.b16 %v1277
        %v1346 = vunpack.c.l.b16 %v1278
        %v1347 = vunpack.c.l.b16 %v1279
        %v1348 = vunpack.c.l.b16 %v1280
        %v1349 = vunpack.c.l.b16 %v1281
        %v1350 = vunpack.c.l.b16 %v1282
        %v1351 = vunpack.c.l.b16 %v1283
        %v1352 = vunpack.c.l.b16 %v1284
        %v1353 = vunpack.c.l.b16 %v1285
        %v1354 = vunpack.c.l.b16 %v1286
        %v1355 = vunpack.c.l.b16 %v1287
        %v1356 = vunpack.c.l.b16 %v1288
        %v1357 = vunpack.c.l.b16 %v1289
        %v1358 = vunpack.c.l.b16 %v1290
        %v1359 = vunpack.c.l.b16 %v1291
        %v1360 = vunpack.c.l.b16 %v1292
        %v1361 = vunpack.c.l.b16 %v1293
        %v1362 = vunpack.c.l.b16 %v1294
        %v1363 = vunpack.c.l.b16 %v1295
        %v1364 = vunpack.c.l.b16 %v1296
        %v1365 = vunpack.c.l.b16 %v1297
        %v1366 = vunpack.c.l.b16 %v1298
        %v1367 = vunpack.c.l.b16 %v1299
        %v1368 = vpack.c.b16 %v1337, %v1336
        %v1369 = vpack.c.b16 %v1339, %v1338
        %v1370 = vpack.c.b16 %v1341, %v1340
        %v1371 = vpack.c.b16 %v1343, %v1342
        %v1372 = vpack.c.b16 %v1345, %v1344
        %v1373 = vpack.c.b16 %v1347, %v1346
        %v1374 = vpack.c.b16 %v1349, %v1348
        %v1375 = vpack.c.b16 %v1351, %v1350
        %v1376 = vpack.c.b16 %v1353, %v1352
        %v1377 = vpack.c.b16 %v1355, %v1354
        %v1378 = vpack.c.b16 %v1357, %v1356
        %v1379 = vpack.c.b16 %v1359, %v1358
        %v1380 = vpack.c.b16 %v1361, %v1360
        %v1381 = vpack.c.b16 %v1363, %v1362
        %v1382 = vpack.c.b16 %v1365, %v1364
        %v1383 = vpack.c.b16 %v1367, %v1366
        %1400 = vmatprep.subr.bf16.mxu0 0
        %1401 = vmatpush1.bf16.msra.mxu0 %v1375
        %1402 = vmatprep.subr.bf16.mxu0 0
        %1403 = vmatpush1.bf16.msra.mxu0 %v1374
        %1404 = vmatprep.subr.bf16.mxu0 0
        %1405 = vmatpush1.bf16.msra.mxu0 %v1373
        %1406 = vmatprep.subr.bf16.mxu0 0
        %1407 = vmatpush1.bf16.msra.mxu0 %v1372
        %1408 = vmatprep.subr.bf16.mxu0 0
        %1409 = vmatpush1.bf16.msra.mxu0 %v1371
        %1410 = vmatprep.subr.bf16.mxu0 0
        %1411 = vmatpush1.bf16.msra.mxu0 %v1370
        %1412 = vmatprep.subr.bf16.mxu0 0
        %1413 = vmatpush1.bf16.msra.mxu0 %v1369
        %1414 = vmatprep.subr.bf16.mxu0 0
        %1415 = vmatpush1.bf16.msra.mxu0 %v1368
        %1416 = vmatprep.subr.bf16.mxu0 0
        %1417 = vmatpush2.bf16.msra.mxu0 %v1383
        %1418 = vmatprep.subr.bf16.mxu0 0
        %1419 = vmatpush2.bf16.msra.mxu0 %v1382
        %1420 = vmatprep.subr.bf16.mxu0 0
        %1421 = vmatpush2.bf16.msra.mxu0 %v1381
        %1422 = vmatprep.subr.bf16.mxu0 0
        %1423 = vmatpush2.bf16.msra.mxu0 %v1380
        %1424 = vmatprep.subr.bf16.mxu0 0
        %1425 = vmatpush2.bf16.msra.mxu0 %v1379
        %1426 = vmatprep.subr.bf16.mxu0 0
        %1427 = vmatpush2.bf16.msra.mxu0 %v1378
        %1428 = vmatprep.subr.bf16.mxu0 0
        %1429 = vmatpush2.bf16.msra.mxu0 %v1377
        %1430 = vmatprep.subr.bf16.mxu0 0
        %1431 = vmatpush2.bf16.msra.mxu0 %v1376
        %1432 = vmatprep.mubr.bf16.mxu0 %v1267
        %1433 = vmatmul.mubr.bf16.gmra.mxu0 %v1266
        %v1434 = vpop.f32.mrf.mxu0
        %v1435 = vadd.f32 %v1303, %v1434
        %v1436 = vpop.f32.mrf.mxu0
        %v1437 = vpop.f32.mrf.mxu0
        %v1438 = vadd.f32 %v1303, %v1437
        %v1439 = vpop.f32.mrf.mxu0
        %1440 = vdwg.mxu0
        %v1441 = vadd.f32 %v1109, %v1435
        %v1442 = vadd.f32 %v1110, %v1438
        %1443 = vadd.xlane.f32.xlu0 %v1441
        %v1444 = vpop.xlane.xlu0 %1443
        %1445 = vadd.xlane.f32.xlu0 %v1442
        %v1446 = vpop.xlane.xlu0 %1445
        %v1447 = vmul.f32 %v1444, %v1080
        %v1448 = vmul.f32 %v1446, %v1080
        %v1449 = vsub.f32 %v1441, %v1447
        %v1450 = vsub.f32 %v1442, %v1448
        %v1451 = vmul.f32 %v1449, %v1449
        %v1452 = vmul.f32 %v1450, %v1450
        %1453 = vadd.xlane.f32.xlu0 %v1451
        %v1454 = vpop.xlane.xlu0 %1453
        %1455 = vadd.xlane.f32.xlu0 %v1452
        %v1456 = vpop.xlane.xlu0 %1455
        %v1457 = vmul.f32 %v1454, %v1080
        %v1458 = vmul.f32 %v1456, %v1080
        %v1459 = vadd.f32 %v1457, 1e-05
        %v1460 = vadd.f32 %v1458, 1e-05
        %v1461 = vrsqrt.pop %v1459
        %v1462 = vrsqrt.pop %v1460
        %v1463 = vmul.f32 %v1449, %v1461
        %v1464 = vmul.f32 %v1450, %v1462
        %v1465 = vlaneseq
        %v1466 = vshrl.u32 %v1465, 7
        %v1467 = vsub.s32 0, %v1466
        %v1468 = vrot.slane %v478, %v1467
        %v1469 = vmul.f32 %v1463, %v1468
        %v1470 = vmul.f32 %v1464, %v1468
        %v1471 = vlaneseq
        %v1472 = vshrl.u32 %v1471, 7
        %v1473 = vsub.s32 0, %v1472
        %v1474 = vrot.slane %v479, %v1473
        %v1475 = vadd.f32 %v1469, %v1474
        %v1476 = vadd.f32 %v1470, %v1474
        %1477 = vst [vmem:[%s462] sm:$0xff] %v1475
        %1478 = vst [vmem:[%s462 + $0x8] sm:$0xff] %v1476
        %s1479 = sand.u32 %s238, 1
        %s1480 = scalar_lea.sflag [#allocation4], %s1479
        %s1481 = sand.u32 %s238, 1
        %s1482 = smul.addr %s1481, 16
        %s1483 = scalar_lea.vmem [#allocation14], %s1482
        // Predicated region
        $region85: #{tpu_custom_call.1} parent=55 // pred_check
          %p1484 = pneg %p248
        $region86: #{tpu_custom_call.1} parent=55 // pred_check_branch
          %1486 = sbr.rel (%p1484) target = $region88
        $region87: #{tpu_custom_call.1} parent=55 // pred_region
          %s1487 = smul.u32 2, %s31
          %s1489 = ssub.s32 256, 256
          %1490 = vsyncadd %s1480, %s1489
          %s1491 = smul.addr %s1487, 128
          %s1492 = scalar_lea.hbm %s9, %s1491
          %s1493 = sshll.u32 %s1483, 4
          %s1494 = int_to_ptr.vmem [resolvable:$true] %s1493
          %1499 = dma.vmem_to_hbm [thread:$0]  %s1494, 256, %s1492, %s1480, 128, 128, 8
        $region88: #{tpu_custom_call.1} parent=55 // pred_fallthru
          _
      $region56: #{tpu_custom_call.1} parent=5 // pred_fallthru
        _
      %p1500 = scmp.le.s32.totalorder 2, %s26
      // Predicated region
      $region89: #{tpu_custom_call.1} parent=5 // pred_check
        %p1501 = pneg %p1500
      $region90: #{tpu_custom_call.1} parent=5 // pred_check_branch
        %1503 = sbr.rel (%p1501) target = $region92
      $region91: #{tpu_custom_call.1} parent=5 // pred_region
        %s1504 = ssub.s32 %s26, 2
        // Predicated region
        $region93: #{tpu_custom_call.1} parent=91 // pred_check
          %p1505 = pneg %p254
        $region94: #{tpu_custom_call.1} parent=91 // pred_check_branch
          %1507 = sbr.rel (%p1505) target = $region96
        $region95: #{tpu_custom_call.1} parent=91 // pred_region
          %s1508 = sand.u32 %s239, 1
          %s1509 = scalar_lea.sflag [#allocation4], %s1508
          %s1510 = sand.u32 %s239, 1
          %s1511 = smul.addr %s1510, 16
          %s1512 = scalar_lea.vmem [#allocation14], %s1511
          %1513 = dma.done %s1509, 256
        $region96: #{tpu_custom_call.1} parent=91 // pred_fallthru
          _
      $region92: #{tpu_custom_call.1} parent=5 // pred_fallthru
        _
    $region6: #{tpu_custom_call.1} parent=1 // loop_footer
      %s30 = sadd.s32 1, %s26
    $region7: #{tpu_custom_call.1} parent=1 // loop_footer_branch
      %25 = sbr.rel target = $region3
    $region8: #{tpu_custom_call.1} parent=1 // loop_exit
      _
    %1514 = vsyncpa [#allocation3], 1
    %s1515 = scalar_lea.sflag [#allocation3], 1
    %1516 = vsyncpa %s1515, 1
    %1517 = vsyncpa [#allocation6], 1
    %s1518 = scalar_lea.sflag [#allocation6], 1
    %1519 = vsyncpa %s1518, 1
    %1520 = vsyncpa [#allocation9], 1
    %1521 = vsyncpa [#allocation12], 1
    %1522 = vsyncpa [#allocation4], 1
    %s1523 = scalar_lea.sflag [#allocation4], 1
    %1524 = vsyncpa %s1523, 1

</llo_original>
